<compile_context>
chip_gen: v7x
topology: tpu7x:2x2x1
jax: 0.10.0
libtpu: 0.0.40
codegen_flags: <defaults>
</compile_context>

<pallas_src>
import functools

import jax
import jax.numpy as jnp
from jax.experimental import pallas as pl
from jax.experimental.pallas import tpu as pltpu

LN_EPS = 1e-5  # PyTorch nn.LayerNorm default


def _layer_norm(x, gamma, beta):
    m = jnp.mean(x, axis=-1, keepdims=True)
    c = x - m
    v = jnp.mean(c * c, axis=-1, keepdims=True)
    return c * jax.lax.rsqrt(v + LN_EPS) * gamma + beta


def _bdot(x, w_bf16):
    """bf16 MXU operands, f32 accumulation."""
    return jnp.dot(x.astype(jnp.bfloat16), w_bf16, preferred_element_type=jnp.float32)


def _jointer_kernel(tT, U, H, V, *refs):
    (enc_ref, dec_ref,
     we_ref, be_ref, ge_ref, bge_ref,
     wd_ref, bd_ref, gd_ref, bgd_ref,
     wf1_ref, bf1_ref, gf1_ref, bgf1_ref,
     wf2_ref, bf2_ref, gf2_ref, bgf2_ref,
     watt_ref, batt_ref,
     wo1f_ref, bo1_ref, go1_ref, bgo1_ref,
     wo2_ref, bo2_ref,
     out_ref) = refs

    enc = enc_ref[0]  # (tT, E) f32
    dec = dec_ref[0]  # (U, D)  f32

    # Encoder / decoder projections: Linear -> LayerNorm -> ReLU (Dropout identity in eval).
    enc_p = jnp.maximum(
        _layer_norm(_bdot(enc, we_ref[...]) + be_ref[...], ge_ref[...], bge_ref[...]), 0.0)  # (tT, H)
    dec_p = jnp.maximum(
        _layer_norm(_bdot(dec, wd_ref[...]) + bd_ref[...], gd_ref[...], bgd_ref[...]), 0.0)  # (U, H)

    # Fusion layer 1, distributed over the (T, U) broadcast-add:
    #   (enc_p[t] + dec_p[u]) @ Wf1 == enc_p[t] @ Wf1 + dec_p[u] @ Wf1
    enc_f = _bdot(enc_p, wf1_ref[...])                                   # (tT, H)
    dec_f = _bdot(dec_p, wf1_ref[...])                                   # (U, H)
    z = enc_f[:, None, :] + dec_f[None, :, :] + bf1_ref[...]             # (tT, U, H)
    f1 = jnp.maximum(_layer_norm(z, gf1_ref[...], bgf1_ref[...]), 0.0)   # (tT, U, H)

    # Fusion layer 2 (lattice-sized, unavoidable).
    f1_flat = f1.reshape(tT * U, H)                                      # last dim preserved
    f2 = jnp.maximum(
        _layer_norm(_bdot(f1_flat, wf2_ref[...]) + bf2_ref[...],
                    gf2_ref[...], bgf2_ref[...]), 0.0)                   # (tT*U, H/2)

    # Attention branch hoisted out of the lattice; Wv@Wao@Wo1a pre-folded on the host.
    att = _bdot(dec_p, watt_ref[...]) + batt_ref[...]                    # (U, H)

    # Output head: fused @ Wo1f + attended-contribution (broadcast over T) + bias.
    o = _bdot(f2, wo1f_ref[...]).reshape(tT, U, H)                       # (tT, U, H)
    o = o + att[None, :, :] + bo1_ref[...]
    o = jnp.maximum(_layer_norm(o, go1_ref[...], bgo1_ref[...]), 0.0)    # (tT, U, H)

    # Final Linear (short_sentence_weight already folded into wo2/bo2).
    logits = _bdot(o.reshape(tT * U, H), wo2_ref[...]) + bo2_ref[...]    # (tT*U, V)
    out_ref[0] = logits.reshape(tT, U, V)


def _choose_tile_t(T, U, H, V):
    """Largest tile along T that divides T and keeps the per-tile lattice within a
    conservative VMEM budget (sized so it also fits v7x's 64 MiB VMEM)."""
    bytes_per_row = (3 * H + 2 * V) * 4            # f32 lattice intermediates + dbl-buffered logits
    budget_rows = max(8, (16 * 1024 * 1024) // max(bytes_per_row, 1))
    if T * U <= budget_rows:
        return T
    for cand in (512, 256, 128, 64, 32, 16, 8):
        if cand < T and T % cand == 0 and cand * U <= budget_rows:
            return cand
    return T  # no suitable power-of-two divisor: run untiled


def enhanced_jointer(enc, dec, params):
    B, T, E = enc.shape
    _, U, D = dec.shape
    H = params["we"].shape[1]
    H2 = params["wf2"].shape[1]
    V = params["wo2"].shape[1]

    f32, bf16 = jnp.float32, jnp.bfloat16

    def as2d(a):  # biases / LN params as (1, N) f32
        return a.reshape(1, -1).astype(f32)

    # ---- host-side algebraic folds (all in f32) ----
    ssw = params["ssw"].reshape(1, V).astype(f32)
    wo2_s = params["wo2"] * ssw                              # fold short_sentence_weight
    bo2_s = params["bo2"].reshape(1, V) * ssw
    wo1 = params["wo1"]                                      # (H/2 + H, H) — cat([fused, attended])
    wo1f, wo1a = wo1[:H2], wo1[H2:]
    # seq-len-1 attention: out_proj(v_proj(dec_p)) @ wo1a == dec_p @ W_att + b_att
    w_att = params["wv"] @ params["wao"] @ wo1a              # (H, H)
    b_att = (params["bv"].reshape(1, H) @ params["wao"]
             + params["bao"].reshape(1, H)) @ wo1a           # (1, H)

    param_list = [
        params["we"].astype(bf16), as2d(params["be"]), as2d(params["ge"]), as2d(params["bge"]),
        params["wd"].astype(bf16), as2d(params["bd"]), as2d(params["gd"]), as2d(params["bgd"]),
        params["wf1"].astype(bf16), as2d(params["bf1"]), as2d(params["gf1"]), as2d(params["bgf1"]),
        params["wf2"].astype(bf16), as2d(params["bf2"]), as2d(params["gf2"]), as2d(params["bgf2"]),
        w_att.astype(bf16), as2d(b_att),
        wo1f.astype(bf16), as2d(params["bo1"]), as2d(params["go1"]), as2d(params["bgo1"]),
        wo2_s.astype(bf16), as2d(bo2_s),
    ]

    tT = _choose_tile_t(T, U, H, V)
    grid = (B, T // tT)

    def wspec(a):
        nd = a.ndim
        return pl.BlockSpec(a.shape, lambda b, t, _nd=nd: (0,) * _nd)

    in_specs = [
        pl.BlockSpec((1, tT, E), lambda b, t: (b, t, 0)),
        pl.BlockSpec((1, U, D), lambda b, t: (b, 0, 0)),
    ] + [wspec(a) for a in param_list]
    out_spec = pl.BlockSpec((1, tT, U, V), lambda b, t: (b, t, 0, 0))

    kernel = functools.partial(_jointer_kernel, tT, U, H, V)

    return pl.pallas_call(
        kernel,
        out_shape=jax.ShapeDtypeStruct((B, T, U, V), jnp.float32),
        grid=grid,
        in_specs=in_specs,
        out_specs=out_spec,
        compiler_params=pltpu.CompilerParams(
            dimension_semantics=("parallel", "parallel"),
            vmem_limit_bytes=48 * 1024 * 1024,
        ),
    )(enc, dec, *param_list)


def init_params(key, E, D, H, V):
    """Synthetic params mirroring the torch module's shapes (weights transposed to (in,out)).
    Biases / LN params get small random values so every code path is exercised."""
    H2 = H // 2
    kw = jax.random.split(key, 8)
    kb = jax.random.split(jax.random.fold_in(key, 7), 20)

    def xav(k, fi, fo):
        lim = (6.0 / (fi + fo)) ** 0.5
        return jax.random.uniform(k, (fi, fo), jnp.float32, -lim, lim)

    def small(k, n):
        return 0.05 * jax.random.normal(k, (n,), jnp.float32)

    return {
        "we": xav(kw[0], E, H), "be": small(kb[0], H), "ge": 1.0 + small(kb[1], H), "bge": small(kb[2], H),
        "wd": xav(kw[1], D, H), "bd": small(kb[3], H), "gd": 1.0 + small(kb[4], H), "bgd": small(kb[5], H),
        "wf1": xav(kw[2], H, H), "bf1": small(kb[6], H), "gf1": 1.0 + small(kb[7], H), "bgf1": small(kb[8], H),
        "wf2": xav(kw[3], H, H2), "bf2": small(kb[9], H2), "gf2": 1.0 + small(kb[10], H2), "bgf2": small(kb[11], H2),
        "wv": xav(kw[4], H, H), "bv": small(kb[12], H),
        "wao": xav(kw[5], H, H), "bao": small(kb[13], H),
        "wo1": xav(kw[6], H2 + H, H), "bo1": small(kb[14], H),
        "go1": 1.0 + small(kb[15], H), "bgo1": small(kb[16], H),
        "wo2": xav(kw[7], H, V), "bo2": small(kb[17], V),
        "ssw": 1.0 + 0.1 * jax.random.normal(kb[18], (V,), jnp.float32),
    }


def reference(enc, dec, p):
    """Pure-JAX, torch-structured forward (eval mode), with bf16 matmul operands / f32
    accumulation to mirror the kernel's MXU precision."""
    bf16 = jnp.bfloat16

    def bdot(x, w):
        return jnp.dot(x.astype(bf16), w.astype(bf16), preferred_element_type=jnp.float32)

    relu = lambda x: jnp.maximum(x, 0.0)
    B, T, _ = enc.shape
    _, U, _ = dec.shape
    H = p["we"].shape[1]

    enc_p = relu(_layer_norm(bdot(enc, p["we"]) + p["be"], p["ge"], p["bge"]))
    dec_p = relu(_layer_norm(bdot(dec, p["wd"]) + p["bd"], p["gd"], p["bgd"]))
    comb = enc_p[:, :, None, :] + dec_p[:, None, :, :]                         # (B, T, U, H)
    f = relu(_layer_norm(bdot(comb, p["wf1"]) + p["bf1"], p["gf1"], p["bgf1"]))
    f = relu(_layer_norm(bdot(f, p["wf2"]) + p["bf2"], p["gf2"], p["bgf2"]))
    # MultiheadAttention with length-1 query/key: softmax == 1 -> out_proj(v_proj(value)).
    att_u = bdot(bdot(dec_p, p["wv"]) + p["bv"], p["wao"]) + p["bao"]          # (B, U, H)
    att = jnp.broadcast_to(att_u[:, None, :, :], (B, T, U, H))
    feat = jnp.concatenate([f, att], axis=-1)
    o = relu(_layer_norm(bdot(feat, p["wo1"]) + p["bo1"], p["go1"], p["bgo1"]))
    return (bdot(o, p["wo2"]) + p["bo2"]) * p["ssw"]


if __name__ == "__main__":
    B, T, U = 2, 8, 8
    E = D = 64        # encoder_dim / decoder_dim (scaled down)
    H, V = 128, 256   # hidden_dim (H//2 = 64), vocab_size — lane-friendly multiples

    key = jax.random.PRNGKey(0)
    kp, kx = jax.random.split(key)
    params = init_params(kp, E, D, H, V)
    k1, k2 = jax.random.split(kx)
    enc = jax.random.normal(k1, (B, T, E), jnp.float32)
    dec = jax.random.normal(k2, (B, U, D), jnp.float32)

    out = jax.block_until_ready(enhanced_jointer(enc, dec, params))
    assert out.shape == (B, T, U, V), out.shape

    ref = reference(enc, dec, params)
    max_err = float(jnp.max(jnp.abs(out - ref)))
    assert jnp.allclose(out, ref, atol=1e-1, rtol=1e-1), max_err

    print("KERNEL_OK")
</pallas_src>

<mosaic_0001>
module attributes {stable_mosaic.version = 11 : i64} {
  func.func @_jointer_kernel(%arg0: i32, %arg1: i32, %arg2: memref<1x8x64xf32, #tpu.memory_space<vmem>>, %arg3: memref<1x8x64xf32, #tpu.memory_space<vmem>>, %arg4: memref<64x128xbf16, #tpu.memory_space<vmem>>, %arg5: memref<1x128xf32, #tpu.memory_space<vmem>>, %arg6: memref<1x128xf32, #tpu.memory_space<vmem>>, %arg7: memref<1x128xf32, #tpu.memory_space<vmem>>, %arg8: memref<64x128xbf16, #tpu.memory_space<vmem>>, %arg9: memref<1x128xf32, #tpu.memory_space<vmem>>, %arg10: memref<1x128xf32, #tpu.memory_space<vmem>>, %arg11: memref<1x128xf32, #tpu.memory_space<vmem>>, %arg12: memref<128x128xbf16, #tpu.memory_space<vmem>>, %arg13: memref<1x128xf32, #tpu.memory_space<vmem>>, %arg14: memref<1x128xf32, #tpu.memory_space<vmem>>, %arg15: memref<1x128xf32, #tpu.memory_space<vmem>>, %arg16: memref<128x64xbf16, #tpu.memory_space<vmem>>, %arg17: memref<1x64xf32, #tpu.memory_space<vmem>>, %arg18: memref<1x64xf32, #tpu.memory_space<vmem>>, %arg19: memref<1x64xf32, #tpu.memory_space<vmem>>, %arg20: memref<128x128xbf16, #tpu.memory_space<vmem>>, %arg21: memref<1x128xf32, #tpu.memory_space<vmem>>, %arg22: memref<64x128xbf16, #tpu.memory_space<vmem>>, %arg23: memref<1x128xf32, #tpu.memory_space<vmem>>, %arg24: memref<1x128xf32, #tpu.memory_space<vmem>>, %arg25: memref<1x128xf32, #tpu.memory_space<vmem>>, %arg26: memref<128x256xbf16, #tpu.memory_space<vmem>>, %arg27: memref<1x256xf32, #tpu.memory_space<vmem>>, %arg28: memref<1x8x8x256xf32, #tpu.memory_space<vmem>>) attributes {dimension_semantics = [#tpu.dimension_semantics<parallel>, #tpu.dimension_semantics<parallel>], iteration_bounds = array<i64: 2, 1>, scalar_prefetch = 0 : i64, scratch_operands = 0 : i64, tpu.core_type = #tpu.core_type<tc>, window_params = [{transform_indices = @transform_0, window_bounds = array<i64: 1, 8, 64>}, {transform_indices = @transform_1, window_bounds = array<i64: 1, 8, 64>}, {pipeline_mode = #tpu.pipeline_mode<synchronous>, transform_indices = @transform_2, window_bounds = array<i64: 64, 128>}, {pipeline_mode = #tpu.pipeline_mode<synchronous>, transform_indices = @transform_3, window_bounds = array<i64: 1, 128>}, {pipeline_mode = #tpu.pipeline_mode<synchronous>, transform_indices = @transform_4, window_bounds = array<i64: 1, 128>}, {pipeline_mode = #tpu.pipeline_mode<synchronous>, transform_indices = @transform_5, window_bounds = array<i64: 1, 128>}, {pipeline_mode = #tpu.pipeline_mode<synchronous>, transform_indices = @transform_6, window_bounds = array<i64: 64, 128>}, {pipeline_mode = #tpu.pipeline_mode<synchronous>, transform_indices = @transform_7, window_bounds = array<i64: 1, 128>}, {pipeline_mode = #tpu.pipeline_mode<synchronous>, transform_indices = @transform_8, window_bounds = array<i64: 1, 128>}, {pipeline_mode = #tpu.pipeline_mode<synchronous>, transform_indices = @transform_9, window_bounds = array<i64: 1, 128>}, {pipeline_mode = #tpu.pipeline_mode<synchronous>, transform_indices = @transform_10, window_bounds = array<i64: 128, 128>}, {pipeline_mode = #tpu.pipeline_mode<synchronous>, transform_indices = @transform_11, window_bounds = array<i64: 1, 128>}, {pipeline_mode = #tpu.pipeline_mode<synchronous>, transform_indices = @transform_12, window_bounds = array<i64: 1, 128>}, {pipeline_mode = #tpu.pipeline_mode<synchronous>, transform_indices = @transform_13, window_bounds = array<i64: 1, 128>}, {pipeline_mode = #tpu.pipeline_mode<synchronous>, transform_indices = @transform_14, window_bounds = array<i64: 128, 64>}, {pipeline_mode = #tpu.pipeline_mode<synchronous>, transform_indices = @transform_15, window_bounds = array<i64: 1, 64>}, {pipeline_mode = #tpu.pipeline_mode<synchronous>, transform_indices = @transform_16, window_bounds = array<i64: 1, 64>}, {pipeline_mode = #tpu.pipeline_mode<synchronous>, transform_indices = @transform_17, window_bounds = array<i64: 1, 64>}, {pipeline_mode = #tpu.pipeline_mode<synchronous>, transform_indices = @transform_18, window_bounds = array<i64: 128, 128>}, {pipeline_mode = #tpu.pipeline_mode<synchronous>, transform_indices = @transform_19, window_bounds = array<i64: 1, 128>}, {pipeline_mode = #tpu.pipeline_mode<synchronous>, transform_indices = @transform_20, window_bounds = array<i64: 64, 128>}, {pipeline_mode = #tpu.pipeline_mode<synchronous>, transform_indices = @transform_21, window_bounds = array<i64: 1, 128>}, {pipeline_mode = #tpu.pipeline_mode<synchronous>, transform_indices = @transform_22, window_bounds = array<i64: 1, 128>}, {pipeline_mode = #tpu.pipeline_mode<synchronous>, transform_indices = @transform_23, window_bounds = array<i64: 1, 128>}, {pipeline_mode = #tpu.pipeline_mode<synchronous>, transform_indices = @transform_24, window_bounds = array<i64: 128, 256>}, {pipeline_mode = #tpu.pipeline_mode<synchronous>, transform_indices = @transform_25, window_bounds = array<i64: 1, 256>}, {transform_indices = @transform_26, window_bounds = array<i64: 1, 8, 8, 256>}]} {
    %c0 = arith.constant 0 : index
    %c0_0 = arith.constant 0 : index
    %c0_1 = arith.constant 0 : index
    %0 = vector.load %arg2[%c0, %c0_0, %c0_1] : memref<1x8x64xf32, #tpu.memory_space<vmem>>, vector<1x8x64xf32>
    %1 = vector.shape_cast %0 : vector<1x8x64xf32> to vector<8x64xf32>
    %c0_2 = arith.constant 0 : index
    %c0_3 = arith.constant 0 : index
    %c0_4 = arith.constant 0 : index
    %2 = vector.load %arg3[%c0_2, %c0_3, %c0_4] : memref<1x8x64xf32, #tpu.memory_space<vmem>>, vector<1x8x64xf32>
    %3 = vector.shape_cast %2 : vector<1x8x64xf32> to vector<8x64xf32>
    %c0_5 = arith.constant 0 : index
    %c0_6 = arith.constant 0 : index
    %4 = vector.load %arg4[%c0_5, %c0_6] : memref<64x128xbf16, #tpu.memory_space<vmem>>, vector<64x128xbf16>
    %5 = arith.truncf %1 : vector<8x64xf32> to vector<8x64xbf16>
    %cst = arith.constant dense<0.000000e+00> : vector<8x128xf32>
    %6 = tpu.matmul %5, %4, %cst {dimension_numbers = #tpu.dot_dimension_numbers<[1], [0], [0], [1], [0, 0, 1, 1], [], []>} : vector<8x64xbf16>, vector<64x128xbf16>, vector<8x128xf32> -> vector<8x128xf32>
    %c0_7 = arith.constant 0 : index
    %c0_8 = arith.constant 0 : index
    %7 = vector.load %arg5[%c0_7, %c0_8] : memref<1x128xf32, #tpu.memory_space<vmem>>, vector<1x128xf32>
    %8 = vector.broadcast %7 : vector<1x128xf32> to vector<8x128xf32>
    %9 = arith.addf %6, %8 : vector<8x128xf32>
    %c0_9 = arith.constant 0 : index
    %c0_10 = arith.constant 0 : index
    %10 = vector.load %arg6[%c0_9, %c0_10] : memref<1x128xf32, #tpu.memory_space<vmem>>, vector<1x128xf32>
    %c0_11 = arith.constant 0 : index
    %c0_12 = arith.constant 0 : index
    %11 = vector.load %arg7[%c0_11, %c0_12] : memref<1x128xf32, #tpu.memory_space<vmem>>, vector<1x128xf32>
    %cst_13 = arith.constant dense<0.000000e+00> : vector<8xf32>
    %12 = vector.multi_reduction <add>, %9, %cst_13 [1] : vector<8x128xf32> to vector<8xf32>
    %13 = vector.shape_cast %12 : vector<8xf32> to vector<8x1xf32>
    %cst_14 = arith.constant 1.280000e+02 : f32
    %14 = vector.broadcast %cst_14 : f32 to vector<8x1xf32>
    %15 = arith.divf %13, %14 : vector<8x1xf32>
    %16 = vector.broadcast %15 : vector<8x1xf32> to vector<8x128xf32>
    %17 = arith.subf %9, %16 : vector<8x128xf32>
    %18 = arith.mulf %17, %17 : vector<8x128xf32>
    %cst_15 = arith.constant dense<0.000000e+00> : vector<8xf32>
    %19 = vector.multi_reduction <add>, %18, %cst_15 [1] : vector<8x128xf32> to vector<8xf32>
    %20 = vector.shape_cast %19 : vector<8xf32> to vector<8x1xf32>
    %cst_16 = arith.constant 1.280000e+02 : f32
    %21 = vector.broadcast %cst_16 : f32 to vector<8x1xf32>
    %22 = arith.divf %20, %21 : vector<8x1xf32>
    %cst_17 = arith.constant 9.99999974E-6 : f32
    %23 = vector.broadcast %cst_17 : f32 to vector<8x1xf32>
    %24 = arith.addf %22, %23 : vector<8x1xf32>
    %25 = math.rsqrt %24 : vector<8x1xf32>
    %26 = vector.broadcast %25 : vector<8x1xf32> to vector<8x128xf32>
    %27 = arith.mulf %17, %26 : vector<8x128xf32>
    %28 = vector.broadcast %10 : vector<1x128xf32> to vector<8x128xf32>
    %29 = arith.mulf %27, %28 : vector<8x128xf32>
    %30 = vector.broadcast %11 : vector<1x128xf32> to vector<8x128xf32>
    %31 = arith.addf %29, %30 : vector<8x128xf32>
    %cst_18 = arith.constant 0.000000e+00 : f32
    %32 = vector.broadcast %cst_18 : f32 to vector<8x128xf32>
    %33 = arith.maximumf %31, %32 : vector<8x128xf32>
    %c0_19 = arith.constant 0 : index
    %c0_20 = arith.constant 0 : index
    %34 = vector.load %arg8[%c0_19, %c0_20] : memref<64x128xbf16, #tpu.memory_space<vmem>>, vector<64x128xbf16>
    %35 = arith.truncf %3 : vector<8x64xf32> to vector<8x64xbf16>
    %cst_21 = arith.constant dense<0.000000e+00> : vector<8x128xf32>
    %36 = tpu.matmul %35, %34, %cst_21 {dimension_numbers = #tpu.dot_dimension_numbers<[1], [0], [0], [1], [0, 0, 1, 1], [], []>} : vector<8x64xbf16>, vector<64x128xbf16>, vector<8x128xf32> -> vector<8x128xf32>
    %c0_22 = arith.constant 0 : index
    %c0_23 = arith.constant 0 : index
    %37 = vector.load %arg9[%c0_22, %c0_23] : memref<1x128xf32, #tpu.memory_space<vmem>>, vector<1x128xf32>
    %38 = vector.broadcast %37 : vector<1x128xf32> to vector<8x128xf32>
    %39 = arith.addf %36, %38 : vector<8x128xf32>
    %c0_24 = arith.constant 0 : index
    %c0_25 = arith.constant 0 : index
    %40 = vector.load %arg10[%c0_24, %c0_25] : memref<1x128xf32, #tpu.memory_space<vmem>>, vector<1x128xf32>
    %c0_26 = arith.constant 0 : index
    %c0_27 = arith.constant 0 : index
    %41 = vector.load %arg11[%c0_26, %c0_27] : memref<1x128xf32, #tpu.memory_space<vmem>>, vector<1x128xf32>
    %cst_28 = arith.constant dense<0.000000e+00> : vector<8xf32>
    %42 = vector.multi_reduction <add>, %39, %cst_28 [1] : vector<8x128xf32> to vector<8xf32>
    %43 = vector.shape_cast %42 : vector<8xf32> to vector<8x1xf32>
    %cst_29 = arith.constant 1.280000e+02 : f32
    %44 = vector.broadcast %cst_29 : f32 to vector<8x1xf32>
    %45 = arith.divf %43, %44 : vector<8x1xf32>
    %46 = vector.broadcast %45 : vector<8x1xf32> to vector<8x128xf32>
    %47 = arith.subf %39, %46 : vector<8x128xf32>
    %48 = arith.mulf %47, %47 : vector<8x128xf32>
    %cst_30 = arith.constant dense<0.000000e+00> : vector<8xf32>
    %49 = vector.multi_reduction <add>, %48, %cst_30 [1] : vector<8x128xf32> to vector<8xf32>
    %50 = vector.shape_cast %49 : vector<8xf32> to vector<8x1xf32>
    %cst_31 = arith.constant 1.280000e+02 : f32
    %51 = vector.broadcast %cst_31 : f32 to vector<8x1xf32>
    %52 = arith.divf %50, %51 : vector<8x1xf32>
    %cst_32 = arith.constant 9.99999974E-6 : f32
    %53 = vector.broadcast %cst_32 : f32 to vector<8x1xf32>
    %54 = arith.addf %52, %53 : vector<8x1xf32>
    %55 = math.rsqrt %54 : vector<8x1xf32>
    %56 = vector.broadcast %55 : vector<8x1xf32> to vector<8x128xf32>
    %57 = arith.mulf %47, %56 : vector<8x128xf32>
    %58 = vector.broadcast %40 : vector<1x128xf32> to vector<8x128xf32>
    %59 = arith.mulf %57, %58 : vector<8x128xf32>
    %60 = vector.broadcast %41 : vector<1x128xf32> to vector<8x128xf32>
    %61 = arith.addf %59, %60 : vector<8x128xf32>
    %cst_33 = arith.constant 0.000000e+00 : f32
    %62 = vector.broadcast %cst_33 : f32 to vector<8x128xf32>
    %63 = arith.maximumf %61, %62 : vector<8x128xf32>
    %c0_34 = arith.constant 0 : index
    %c0_35 = arith.constant 0 : index
    %64 = vector.load %arg12[%c0_34, %c0_35] : memref<128x128xbf16, #tpu.memory_space<vmem>>, vector<128x128xbf16>
    %65 = arith.truncf %33 : vector<8x128xf32> to vector<8x128xbf16>
    %cst_36 = arith.constant dense<0.000000e+00> : vector<8x128xf32>
    %66 = tpu.matmul %65, %64, %cst_36 {dimension_numbers = #tpu.dot_dimension_numbers<[1], [0], [0], [1], [0, 0, 1, 1], [], []>} : vector<8x128xbf16>, vector<128x128xbf16>, vector<8x128xf32> -> vector<8x128xf32>
    %c0_37 = arith.constant 0 : index
    %c0_38 = arith.constant 0 : index
    %67 = vector.load %arg12[%c0_37, %c0_38] : memref<128x128xbf16, #tpu.memory_space<vmem>>, vector<128x128xbf16>
    %68 = arith.truncf %63 : vector<8x128xf32> to vector<8x128xbf16>
    %cst_39 = arith.constant dense<0.000000e+00> : vector<8x128xf32>
    %69 = tpu.matmul %68, %67, %cst_39 {dimension_numbers = #tpu.dot_dimension_numbers<[1], [0], [0], [1], [0, 0, 1, 1], [], []>} : vector<8x128xbf16>, vector<128x128xbf16>, vector<8x128xf32> -> vector<8x128xf32>
    %70 = vector.shape_cast %66 : vector<8x128xf32> to vector<8x1x128xf32>
    %71 = vector.shape_cast %69 : vector<8x128xf32> to vector<1x8x128xf32>
    %72 = vector.broadcast %70 : vector<8x1x128xf32> to vector<8x8x128xf32>
    %73 = vector.broadcast %71 : vector<1x8x128xf32> to vector<8x8x128xf32>
    %74 = arith.addf %72, %73 : vector<8x8x128xf32>
    %c0_40 = arith.constant 0 : index
    %c0_41 = arith.constant 0 : index
    %75 = vector.load %arg13[%c0_40, %c0_41] : memref<1x128xf32, #tpu.memory_space<vmem>>, vector<1x128xf32>
    %76 = vector.shape_cast %75 : vector<1x128xf32> to vector<1x1x128xf32>
    %77 = vector.broadcast %76 : vector<1x1x128xf32> to vector<8x8x128xf32>
    %78 = arith.addf %74, %77 : vector<8x8x128xf32>
    %c0_42 = arith.constant 0 : index
    %c0_43 = arith.constant 0 : index
    %79 = vector.load %arg14[%c0_42, %c0_43] : memref<1x128xf32, #tpu.memory_space<vmem>>, vector<1x128xf32>
    %c0_44 = arith.constant 0 : index
    %c0_45 = arith.constant 0 : index
    %80 = vector.load %arg15[%c0_44, %c0_45] : memref<1x128xf32, #tpu.memory_space<vmem>>, vector<1x128xf32>
    %cst_46 = arith.constant dense<0.000000e+00> : vector<8x8xf32>
    %81 = vector.multi_reduction <add>, %78, %cst_46 [2] : vector<8x8x128xf32> to vector<8x8xf32>
    %82 = vector.shape_cast %81 : vector<8x8xf32> to vector<8x8x1xf32>
    %cst_47 = arith.constant 1.280000e+02 : f32
    %83 = vector.broadcast %cst_47 : f32 to vector<8x8x1xf32>
    %84 = arith.divf %82, %83 : vector<8x8x1xf32>
    %85 = vector.broadcast %84 : vector<8x8x1xf32> to vector<8x8x128xf32>
    %86 = arith.subf %78, %85 : vector<8x8x128xf32>
    %87 = arith.mulf %86, %86 : vector<8x8x128xf32>
    %cst_48 = arith.constant dense<0.000000e+00> : vector<8x8xf32>
    %88 = vector.multi_reduction <add>, %87, %cst_48 [2] : vector<8x8x128xf32> to vector<8x8xf32>
    %89 = vector.shape_cast %88 : vector<8x8xf32> to vector<8x8x1xf32>
    %cst_49 = arith.constant 1.280000e+02 : f32
    %90 = vector.broadcast %cst_49 : f32 to vector<8x8x1xf32>
    %91 = arith.divf %89, %90 : vector<8x8x1xf32>
    %cst_50 = arith.constant 9.99999974E-6 : f32
    %92 = vector.broadcast %cst_50 : f32 to vector<8x8x1xf32>
    %93 = arith.addf %91, %92 : vector<8x8x1xf32>
    %94 = math.rsqrt %93 : vector<8x8x1xf32>
    %95 = vector.broadcast %94 : vector<8x8x1xf32> to vector<8x8x128xf32>
    %96 = arith.mulf %86, %95 : vector<8x8x128xf32>
    %97 = vector.shape_cast %79 : vector<1x128xf32> to vector<1x1x128xf32>
    %98 = vector.broadcast %97 : vector<1x1x128xf32> to vector<8x8x128xf32>
    %99 = arith.mulf %96, %98 : vector<8x8x128xf32>
    %100 = vector.shape_cast %80 : vector<1x128xf32> to vector<1x1x128xf32>
    %101 = vector.broadcast %100 : vector<1x1x128xf32> to vector<8x8x128xf32>
    %102 = arith.addf %99, %101 : vector<8x8x128xf32>
    %cst_51 = arith.constant 0.000000e+00 : f32
    %103 = vector.broadcast %cst_51 : f32 to vector<8x8x128xf32>
    %104 = arith.maximumf %102, %103 : vector<8x8x128xf32>
    %105 = vector.shape_cast %104 : vector<8x8x128xf32> to vector<64x128xf32>
    %c0_52 = arith.constant 0 : index
    %c0_53 = arith.constant 0 : index
    %106 = vector.load %arg16[%c0_52, %c0_53] : memref<128x64xbf16, #tpu.memory_space<vmem>>, vector<128x64xbf16>
    %107 = arith.truncf %105 : vector<64x128xf32> to vector<64x128xbf16>
    %cst_54 = arith.constant dense<0.000000e+00> : vector<64x64xf32>
    %108 = tpu.matmul %107, %106, %cst_54 {dimension_numbers = #tpu.dot_dimension_numbers<[1], [0], [0], [1], [0, 0, 1, 1], [], []>} : vector<64x128xbf16>, vector<128x64xbf16>, vector<64x64xf32> -> vector<64x64xf32>
    %c0_55 = arith.constant 0 : index
    %c0_56 = arith.constant 0 : index
    %109 = vector.load %arg17[%c0_55, %c0_56] : memref<1x64xf32, #tpu.memory_space<vmem>>, vector<1x64xf32>
    %110 = vector.broadcast %109 : vector<1x64xf32> to vector<64x64xf32>
    %111 = arith.addf %108, %110 : vector<64x64xf32>
    %c0_57 = arith.constant 0 : index
    %c0_58 = arith.constant 0 : index
    %112 = vector.load %arg18[%c0_57, %c0_58] : memref<1x64xf32, #tpu.memory_space<vmem>>, vector<1x64xf32>
    %c0_59 = arith.constant 0 : index
    %c0_60 = arith.constant 0 : index
    %113 = vector.load %arg19[%c0_59, %c0_60] : memref<1x64xf32, #tpu.memory_space<vmem>>, vector<1x64xf32>
    %cst_61 = arith.constant dense<0.000000e+00> : vector<64xf32>
    %114 = vector.multi_reduction <add>, %111, %cst_61 [1] : vector<64x64xf32> to vector<64xf32>
    %115 = vector.shape_cast %114 : vector<64xf32> to vector<64x1xf32>
    %cst_62 = arith.constant 6.400000e+01 : f32
    %116 = vector.broadcast %cst_62 : f32 to vector<64x1xf32>
    %117 = arith.divf %115, %116 : vector<64x1xf32>
    %118 = vector.broadcast %117 : vector<64x1xf32> to vector<64x64xf32>
    %119 = arith.subf %111, %118 : vector<64x64xf32>
    %120 = arith.mulf %119, %119 : vector<64x64xf32>
    %cst_63 = arith.constant dense<0.000000e+00> : vector<64xf32>
    %121 = vector.multi_reduction <add>, %120, %cst_63 [1] : vector<64x64xf32> to vector<64xf32>
    %122 = vector.shape_cast %121 : vector<64xf32> to vector<64x1xf32>
    %cst_64 = arith.constant 6.400000e+01 : f32
    %123 = vector.broadcast %cst_64 : f32 to vector<64x1xf32>
    %124 = arith.divf %122, %123 : vector<64x1xf32>
    %cst_65 = arith.constant 9.99999974E-6 : f32
    %125 = vector.broadcast %cst_65 : f32 to vector<64x1xf32>
    %126 = arith.addf %124, %125 : vector<64x1xf32>
    %127 = math.rsqrt %126 : vector<64x1xf32>
    %128 = vector.broadcast %127 : vector<64x1xf32> to vector<64x64xf32>
    %129 = arith.mulf %119, %128 : vector<64x64xf32>
    %130 = vector.broadcast %112 : vector<1x64xf32> to vector<64x64xf32>
    %131 = arith.mulf %129, %130 : vector<64x64xf32>
    %132 = vector.broadcast %113 : vector<1x64xf32> to vector<64x64xf32>
    %133 = arith.addf %131, %132 : vector<64x64xf32>
    %cst_66 = arith.constant 0.000000e+00 : f32
    %134 = vector.broadcast %cst_66 : f32 to vector<64x64xf32>
    %135 = arith.maximumf %133, %134 : vector<64x64xf32>
    %c0_67 = arith.constant 0 : index
    %c0_68 = arith.constant 0 : index
    %136 = vector.load %arg20[%c0_67, %c0_68] : memref<128x128xbf16, #tpu.memory_space<vmem>>, vector<128x128xbf16>
    %137 = arith.truncf %63 : vector<8x128xf32> to vector<8x128xbf16>
    %cst_69 = arith.constant dense<0.000000e+00> : vector<8x128xf32>
    %138 = tpu.matmul %137, %136, %cst_69 {dimension_numbers = #tpu.dot_dimension_numbers<[1], [0], [0], [1], [0, 0, 1, 1], [], []>} : vector<8x128xbf16>, vector<128x128xbf16>, vector<8x128xf32> -> vector<8x128xf32>
    %c0_70 = arith.constant 0 : index
    %c0_71 = arith.constant 0 : index
    %139 = vector.load %arg21[%c0_70, %c0_71] : memref<1x128xf32, #tpu.memory_space<vmem>>, vector<1x128xf32>
    %140 = vector.broadcast %139 : vector<1x128xf32> to vector<8x128xf32>
    %141 = arith.addf %138, %140 : vector<8x128xf32>
    %c0_72 = arith.constant 0 : index
    %c0_73 = arith.constant 0 : index
    %142 = vector.load %arg22[%c0_72, %c0_73] : memref<64x128xbf16, #tpu.memory_space<vmem>>, vector<64x128xbf16>
    %143 = arith.truncf %135 : vector<64x64xf32> to vector<64x64xbf16>
    %cst_74 = arith.constant dense<0.000000e+00> : vector<64x128xf32>
    %144 = tpu.matmul %143, %142, %cst_74 {dimension_numbers = #tpu.dot_dimension_numbers<[1], [0], [0], [1], [0, 0, 1, 1], [], []>} : vector<64x64xbf16>, vector<64x128xbf16>, vector<64x128xf32> -> vector<64x128xf32>
    %145 = vector.shape_cast %144 : vector<64x128xf32> to vector<8x8x128xf32>
    %146 = vector.shape_cast %141 : vector<8x128xf32> to vector<1x8x128xf32>
    %147 = vector.broadcast %146 : vector<1x8x128xf32> to vector<8x8x128xf32>
    %148 = arith.addf %145, %147 : vector<8x8x128xf32>
    %c0_75 = arith.constant 0 : index
    %c0_76 = arith.constant 0 : index
    %149 = vector.load %arg23[%c0_75, %c0_76] : memref<1x128xf32, #tpu.memory_space<vmem>>, vector<1x128xf32>
    %150 = vector.shape_cast %149 : vector<1x128xf32> to vector<1x1x128xf32>
    %151 = vector.broadcast %150 : vector<1x1x128xf32> to vector<8x8x128xf32>
    %152 = arith.addf %148, %151 : vector<8x8x128xf32>
    %c0_77 = arith.constant 0 : index
    %c0_78 = arith.constant 0 : index
    %153 = vector.load %arg24[%c0_77, %c0_78] : memref<1x128xf32, #tpu.memory_space<vmem>>, vector<1x128xf32>
    %c0_79 = arith.constant 0 : index
    %c0_80 = arith.constant 0 : index
    %154 = vector.load %arg25[%c0_79, %c0_80] : memref<1x128xf32, #tpu.memory_space<vmem>>, vector<1x128xf32>
    %cst_81 = arith.constant dense<0.000000e+00> : vector<8x8xf32>
    %155 = vector.multi_reduction <add>, %152, %cst_81 [2] : vector<8x8x128xf32> to vector<8x8xf32>
    %156 = vector.shape_cast %155 : vector<8x8xf32> to vector<8x8x1xf32>
    %cst_82 = arith.constant 1.280000e+02 : f32
    %157 = vector.broadcast %cst_82 : f32 to vector<8x8x1xf32>
    %158 = arith.divf %156, %157 : vector<8x8x1xf32>
    %159 = vector.broadcast %158 : vector<8x8x1xf32> to vector<8x8x128xf32>
    %160 = arith.subf %152, %159 : vector<8x8x128xf32>
    %161 = arith.mulf %160, %160 : vector<8x8x128xf32>
    %cst_83 = arith.constant dense<0.000000e+00> : vector<8x8xf32>
    %162 = vector.multi_reduction <add>, %161, %cst_83 [2] : vector<8x8x128xf32> to vector<8x8xf32>
    %163 = vector.shape_cast %162 : vector<8x8xf32> to vector<8x8x1xf32>
    %cst_84 = arith.constant 1.280000e+02 : f32
    %164 = vector.broadcast %cst_84 : f32 to vector<8x8x1xf32>
    %165 = arith.divf %163, %164 : vector<8x8x1xf32>
    %cst_85 = arith.constant 9.99999974E-6 : f32
    %166 = vector.broadcast %cst_85 : f32 to vector<8x8x1xf32>
    %167 = arith.addf %165, %166 : vector<8x8x1xf32>
    %168 = math.rsqrt %167 : vector<8x8x1xf32>
    %169 = vector.broadcast %168 : vector<8x8x1xf32> to vector<8x8x128xf32>
    %170 = arith.mulf %160, %169 : vector<8x8x128xf32>
    %171 = vector.shape_cast %153 : vector<1x128xf32> to vector<1x1x128xf32>
    %172 = vector.broadcast %171 : vector<1x1x128xf32> to vector<8x8x128xf32>
    %173 = arith.mulf %170, %172 : vector<8x8x128xf32>
    %174 = vector.shape_cast %154 : vector<1x128xf32> to vector<1x1x128xf32>
    %175 = vector.broadcast %174 : vector<1x1x128xf32> to vector<8x8x128xf32>
    %176 = arith.addf %173, %175 : vector<8x8x128xf32>
    %cst_86 = arith.constant 0.000000e+00 : f32
    %177 = vector.broadcast %cst_86 : f32 to vector<8x8x128xf32>
    %178 = arith.maximumf %176, %177 : vector<8x8x128xf32>
    %179 = vector.shape_cast %178 : vector<8x8x128xf32> to vector<64x128xf32>
    %c0_87 = arith.constant 0 : index
    %c0_88 = arith.constant 0 : index
    %180 = vector.load %arg26[%c0_87, %c0_88] : memref<128x256xbf16, #tpu.memory_space<vmem>>, vector<128x256xbf16>
    %181 = arith.truncf %179 : vector<64x128xf32> to vector<64x128xbf16>
    %cst_89 = arith.constant dense<0.000000e+00> : vector<64x256xf32>
    %182 = tpu.matmul %181, %180, %cst_89 {dimension_numbers = #tpu.dot_dimension_numbers<[1], [0], [0], [1], [0, 0, 1, 1], [], []>} : vector<64x128xbf16>, vector<128x256xbf16>, vector<64x256xf32> -> vector<64x256xf32>
    %c0_90 = arith.constant 0 : index
    %c0_91 = arith.constant 0 : index
    %183 = vector.load %arg27[%c0_90, %c0_91] : memref<1x256xf32, #tpu.memory_space<vmem>>, vector<1x256xf32>
    %184 = vector.broadcast %183 : vector<1x256xf32> to vector<64x256xf32>
    %185 = arith.addf %182, %184 : vector<64x256xf32>
    %186 = vector.shape_cast %185 : vector<64x256xf32> to vector<8x8x256xf32>
    %c0_92 = arith.constant 0 : index
    %c0_93 = arith.constant 0 : index
    %c0_94 = arith.constant 0 : index
    %c0_95 = arith.constant 0 : index
    %187 = vector.load %arg28[%c0_92, %c0_93, %c0_94, %c0_95] : memref<1x8x8x256xf32, #tpu.memory_space<vmem>>, vector<1x8x8x256xf32>
    %188 = vector.shape_cast %187 : vector<1x8x8x256xf32> to vector<8x8x256xf32>
    %189 = vector.shape_cast %186 : vector<8x8x256xf32> to vector<1x8x8x256xf32>
    tpu.vector_store %arg28[%c0_92, %c0_93, %c0_94, %c0_95], %189 {strides = array<i32>} : memref<1x8x8x256xf32, #tpu.memory_space<vmem>>, vector<1x8x8x256xf32>,
    return
  }
  func.func @transform_0(%arg0: i32, %arg1: i32) -> (i32, i32, i32) {
    %c0_i32 = arith.constant 0 : i32
    %c0_i32_0 = arith.constant 0 : i32
    return %arg0, %arg1, %c0_i32 : i32, i32, i32
  }
  func.func @transform_1(%arg0: i32, %arg1: i32) -> (i32, i32, i32) {
    %c0_i32 = arith.constant 0 : i32
    %c0_i32_0 = arith.constant 0 : i32
    %c0_i32_1 = arith.constant 0 : i32
    return %arg0, %c0_i32, %c0_i32_0 : i32, i32, i32
  }
  func.func @transform_2(%arg0: i32, %arg1: i32) -> (i32, i32) {
    %c0_i32 = arith.constant 0 : i32
    %c0_i32_0 = arith.constant 0 : i32
    %c0_i32_1 = arith.constant 0 : i32
    return %c0_i32, %c0_i32_0 : i32, i32
  }
  func.func @transform_3(%arg0: i32, %arg1: i32) -> (i32, i32) {
    %c0_i32 = arith.constant 0 : i32
    %c0_i32_0 = arith.constant 0 : i32
    %c0_i32_1 = arith.constant 0 : i32
    return %c0_i32, %c0_i32_0 : i32, i32
  }
  func.func @transform_4(%arg0: i32, %arg1: i32) -> (i32, i32) {
    %c0_i32 = arith.constant 0 : i32
    %c0_i32_0 = arith.constant 0 : i32
    %c0_i32_1 = arith.constant 0 : i32
    return %c0_i32, %c0_i32_0 : i32, i32
  }
  func.func @transform_5(%arg0: i32, %arg1: i32) -> (i32, i32) {
    %c0_i32 = arith.constant 0 : i32
    %c0_i32_0 = arith.constant 0 : i32
    %c0_i32_1 = arith.constant 0 : i32
    return %c0_i32, %c0_i32_0 : i32, i32
  }
  func.func @transform_6(%arg0: i32, %arg1: i32) -> (i32, i32) {
    %c0_i32 = arith.constant 0 : i32
    %c0_i32_0 = arith.constant 0 : i32
    %c0_i32_1 = arith.constant 0 : i32
    return %c0_i32, %c0_i32_0 : i32, i32
  }
  func.func @transform_7(%arg0: i32, %arg1: i32) -> (i32, i32) {
    %c0_i32 = arith.constant 0 : i32
    %c0_i32_0 = arith.constant 0 : i32
    %c0_i32_1 = arith.constant 0 : i32
    return %c0_i32, %c0_i32_0 : i32, i32
  }
  func.func @transform_8(%arg0: i32, %arg1: i32) -> (i32, i32) {
    %c0_i32 = arith.constant 0 : i32
    %c0_i32_0 = arith.constant 0 : i32
    %c0_i32_1 = arith.constant 0 : i32
    return %c0_i32, %c0_i32_0 : i32, i32
  }
  func.func @transform_9(%arg0: i32, %arg1: i32) -> (i32, i32) {
    %c0_i32 = arith.constant 0 : i32
    %c0_i32_0 = arith.constant 0 : i32
    %c0_i32_1 = arith.constant 0 : i32
    return %c0_i32, %c0_i32_0 : i32, i32
  }
  func.func @transform_10(%arg0: i32, %arg1: i32) -> (i32, i32) {
    %c0_i32 = arith.constant 0 : i32
    %c0_i32_0 = arith.constant 0 : i32
    %c0_i32_1 = arith.constant 0 : i32
    return %c0_i32, %c0_i32_0 : i32, i32
  }
  func.func @transform_11(%arg0: i32, %arg1: i32) -> (i32, i32) {
    %c0_i32 = arith.constant 0 : i32
    %c0_i32_0 = arith.constant 0 : i32
    %c0_i32_1 = arith.constant 0 : i32
    return %c0_i32, %c0_i32_0 : i32, i32
  }
  func.func @transform_12(%arg0: i32, %arg1: i32) -> (i32, i32) {
    %c0_i32 = arith.constant 0 : i32
    %c0_i32_0 = arith.constant 0 : i32
    %c0_i32_1 = arith.constant 0 : i32
    return %c0_i32, %c0_i32_0 : i32, i32
  }
  func.func @transform_13(%arg0: i32, %arg1: i32) -> (i32, i32) {
    %c0_i32 = arith.constant 0 : i32
    %c0_i32_0 = arith.constant 0 : i32
    %c0_i32_1 = arith.constant 0 : i32
    return %c0_i32, %c0_i32_0 : i32, i32
  }
  func.func @transform_14(%arg0: i32, %arg1: i32) -> (i32, i32) {
    %c0_i32 = arith.constant 0 : i32
    %c0_i32_0 = arith.constant 0 : i32
    %c0_i32_1 = arith.constant 0 : i32
    return %c0_i32, %c0_i32_0 : i32, i32
  }
  func.func @transform_15(%arg0: i32, %arg1: i32) -> (i32, i32) {
    %c0_i32 = arith.constant 0 : i32
    %c0_i32_0 = arith.constant 0 : i32
    %c0_i32_1 = arith.constant 0 : i32
    return %c0_i32, %c0_i32_0 : i32, i32
  }
  func.func @transform_16(%arg0: i32, %arg1: i32) -> (i32, i32) {
    %c0_i32 = arith.constant 0 : i32
    %c0_i32_0 = arith.constant 0 : i32
    %c0_i32_1 = arith.constant 0 : i32
    return %c0_i32, %c0_i32_0 : i32, i32
  }
  func.func @transform_17(%arg0: i32, %arg1: i32) -> (i32, i32) {
    %c0_i32 = arith.constant 0 : i32
    %c0_i32_0 = arith.constant 0 : i32
    %c0_i32_1 = arith.constant 0 : i32
    return %c0_i32, %c0_i32_0 : i32, i32
  }
  func.func @transform_18(%arg0: i32, %arg1: i32) -> (i32, i32) {
    %c0_i32 = arith.constant 0 : i32
    %c0_i32_0 = arith.constant 0 : i32
    %c0_i32_1 = arith.constant 0 : i32
    return %c0_i32, %c0_i32_0 : i32, i32
  }
  func.func @transform_19(%arg0: i32, %arg1: i32) -> (i32, i32) {
    %c0_i32 = arith.constant 0 : i32
    %c0_i32_0 = arith.constant 0 : i32
    %c0_i32_1 = arith.constant 0 : i32
    return %c0_i32, %c0_i32_0 : i32, i32
  }
  func.func @transform_20(%arg0: i32, %arg1: i32) -> (i32, i32) {
    %c0_i32 = arith.constant 0 : i32
    %c0_i32_0 = arith.constant 0 : i32
    %c0_i32_1 = arith.constant 0 : i32
    return %c0_i32, %c0_i32_0 : i32, i32
  }
  func.func @transform_21(%arg0: i32, %arg1: i32) -> (i32, i32) {
    %c0_i32 = arith.constant 0 : i32
    %c0_i32_0 = arith.constant 0 : i32
    %c0_i32_1 = arith.constant 0 : i32
    return %c0_i32, %c0_i32_0 : i32, i32
  }
  func.func @transform_22(%arg0: i32, %arg1: i32) -> (i32, i32) {
    %c0_i32 = arith.constant 0 : i32
    %c0_i32_0 = arith.constant 0 : i32
    %c0_i32_1 = arith.constant 0 : i32
    return %c0_i32, %c0_i32_0 : i32, i32
  }
  func.func @transform_23(%arg0: i32, %arg1: i32) -> (i32, i32) {
    %c0_i32 = arith.constant 0 : i32
    %c0_i32_0 = arith.constant 0 : i32
    %c0_i32_1 = arith.constant 0 : i32
    return %c0_i32, %c0_i32_0 : i32, i32
  }
  func.func @transform_24(%arg0: i32, %arg1: i32) -> (i32, i32) {
    %c0_i32 = arith.constant 0 : i32
    %c0_i32_0 = arith.constant 0 : i32
    %c0_i32_1 = arith.constant 0 : i32
    return %c0_i32, %c0_i32_0 : i32, i32
  }
  func.func @transform_25(%arg0: i32, %arg1: i32) -> (i32, i32) {
    %c0_i32 = arith.constant 0 : i32
    %c0_i32_0 = arith.constant 0 : i32
    %c0_i32_1 = arith.constant 0 : i32
    return %c0_i32, %c0_i32_0 : i32, i32
  }
  func.func @transform_26(%arg0: i32, %arg1: i32) -> (i32, i32, i32, i32) {
    %c0_i32 = arith.constant 0 : i32
    %c0_i32_0 = arith.constant 0 : i32
    %c0_i32_1 = arith.constant 0 : i32
    return %arg0, %arg1, %c0_i32, %c0_i32_0 : i32, i32, i32, i32
  }
}

</mosaic_0001>

<llo_original>
// kernel: tpu_custom_call.1
$region0: #{tpu_custom_call.1}
  #allocation0 [shape = 'u32[]', space=smem, size = 0x4, offset = 0x4, fixed_abs, tag = 'smem constant byte address 0x4 - core index']
  #allocation1 [shape = 'u32[144,128]{1,0:T(1,128)}', space=vmem, size = 0x12000, scoped, tag = 'internal scratch']
  %s0 = inlined_call_operand.vmem [shape: f32[2,8,64], index: 0, kind: input, shape index: {}]
  %s1 = inlined_call_operand.hbm [shape: f32[2,8,64], index: 1, kind: input, shape index: {}]
  %s2 = inlined_call_operand.vmem [shape: bf16[64,128], index: 2, kind: input, shape index: {}]
  %s3 = inlined_call_operand.vmem [shape: f32[1,128], index: 3, kind: input, shape index: {}]
  %s4 = inlined_call_operand.vmem [shape: f32[1,128], index: 4, kind: input, shape index: {}]
  %s5 = inlined_call_operand.vmem [shape: f32[1,128], index: 5, kind: input, shape index: {}]
  %s6 = inlined_call_operand.hbm [shape: bf16[64,128], index: 6, kind: input, shape index: {}]
  %s7 = inlined_call_operand.vmem [shape: f32[1,128], index: 7, kind: input, shape index: {}]
  %s8 = inlined_call_operand.vmem [shape: f32[1,128], index: 8, kind: input, shape index: {}]
  %s9 = inlined_call_operand.vmem [shape: f32[1,128], index: 9, kind: input, shape index: {}]
  %s10 = inlined_call_operand.hbm [shape: bf16[128,128], index: 10, kind: input, shape index: {}]
  %s11 = inlined_call_operand.vmem [shape: f32[1,128], index: 11, kind: input, shape index: {}]
  %s12 = inlined_call_operand.vmem [shape: f32[1,128], index: 12, kind: input, shape index: {}]
  %s13 = inlined_call_operand.hbm [shape: f32[1,128], index: 13, kind: input, shape index: {}]
  %s14 = inlined_call_operand.vmem [shape: bf16[128,64], index: 14, kind: input, shape index: {}]
  %s15 = inlined_call_operand.hbm [shape: f32[1,64], index: 15, kind: input, shape index: {}]
  %s16 = inlined_call_operand.hbm [shape: f32[1,64], index: 16, kind: input, shape index: {}]
  %s17 = inlined_call_operand.hbm [shape: f32[1,64], index: 17, kind: input, shape index: {}]
  %s18 = inlined_call_operand.hbm [shape: bf16[128,128], index: 18, kind: input, shape index: {}]
  %s19 = inlined_call_operand.hbm [shape: f32[1,128], index: 19, kind: input, shape index: {}]
  %s20 = inlined_call_operand.hbm [shape: bf16[64,128], index: 20, kind: input, shape index: {}]
  %s21 = inlined_call_operand.hbm [shape: f32[1,128], index: 21, kind: input, shape index: {}]
  %s22 = inlined_call_operand.hbm [shape: f32[1,128], index: 22, kind: input, shape index: {}]
  %s23 = inlined_call_operand.hbm [shape: f32[1,128], index: 23, kind: input, shape index: {}]
  %s24 = inlined_call_operand.vmem [shape: bf16[128,256], index: 24, kind: input, shape index: {}]
  %s25 = inlined_call_operand.vmem [shape: f32[1,256], index: 25, kind: input, shape index: {}]
  %s26 = inlined_call_operand.hbm [shape: f32[2,8,8,256], index: 26, kind: output, shape index: {}]
  %s27 = sld [smem:[#allocation0]]
  $region189: #{tpu_custom_call.1} parent=0
    _
  %s29 = ssub.s32 1, %s27
  %s30 = scalar_select 0, %s29, %s27
  $region1: #{tpu_custom_call.1} parent=0
    #allocation2 [shape = 'u8[8192]{0}', space=vmem, size = 0x2000, scoped, tag = 'input window, operand 1']
    #allocation3 [shape = 's32[2]{0}', space=sflag, size = 0x8, scoped, tag = 'scoped memory for tpu_custom_call.1']
    #allocation4 [shape = 's32[2]{0}', space=sflag, size = 0x8, scoped, tag = 'scoped memory for tpu_custom_call.1']
    #allocation5 [shape = 'u8[16384]{0}', space=vmem, size = 0x4000, scoped, tag = 'input window, operand 6, single buffered']
    #allocation6 [shape = 's32[1]{0}', space=sflag, size = 0x4, scoped, tag = 'scoped memory for tpu_custom_call.1']
    #allocation7 [shape = 'u8[32768]{0}', space=vmem, size = 0x8000, scoped, tag = 'input window, operand 10, single buffered']
    #allocation8 [shape = 'u8[512]{0}', space=vmem, size = 0x400, scoped, tag = 'input window, operand 13, single buffered']
    #allocation9 [shape = 's32[1]{0}', space=sflag, size = 0x4, scoped, tag = 'scoped memory for tpu_custom_call.1']
    #allocation10 [shape = 'u8[512]{0}', space=vmem, size = 0x400, scoped, tag = 'input window, operand 15, single buffered']
    #allocation11 [shape = 'u8[512]{0}', space=vmem, size = 0x400, scoped, tag = 'input window, operand 16, single buffered']
    #allocation12 [shape = 's32[1]{0}', space=sflag, size = 0x4, scoped, tag = 'scoped memory for tpu_custom_call.1']
    #allocation13 [shape = 'u8[512]{0}', space=vmem, size = 0x400, scoped, tag = 'input window, operand 17, single buffered']
    #allocation14 [shape = 'u8[32768]{0}', space=vmem, size = 0x8000, scoped, tag = 'input window, operand 18, single buffered']
    #allocation15 [shape = 's32[1]{0}', space=sflag, size = 0x4, scoped, tag = 'scoped memory for tpu_custom_call.1']
    #allocation16 [shape = 'u8[512]{0}', space=vmem, size = 0x400, scoped, tag = 'input window, operand 19, single buffered']
    #allocation17 [shape = 'u8[16384]{0}', space=vmem, size = 0x4000, scoped, tag = 'input window, operand 20, single buffered']
    #allocation18 [shape = 's32[1]{0}', space=sflag, size = 0x4, scoped, tag = 'scoped memory for tpu_custom_call.1']
    #allocation19 [shape = 'u8[512]{0}', space=vmem, size = 0x400, scoped, tag = 'input window, operand 21, single buffered']
    #allocation20 [shape = 'u8[512]{0}', space=vmem, size = 0x400, scoped, tag = 'input window, operand 22, single buffered']
    #allocation21 [shape = 's32[1]{0}', space=sflag, size = 0x4, scoped, tag = 'scoped memory for tpu_custom_call.1']
    #allocation22 [shape = 'u8[512]{0}', space=vmem, size = 0x400, scoped, tag = 'input window, operand 23, single buffered']
    #allocation23 [shape = 'u8[131072]{0}', space=vmem, size = 0x20000, scoped, tag = 'output window, operand 0']
    %31 = vsyncpa [#allocation3], 0
    %s32 = scalar_lea.sflag [#allocation3], 1
    %33 = vsyncpa %s32, 0
    %34 = vsyncpa [#allocation6], 0
    %35 = vsyncpa [#allocation9], 0
    %36 = vsyncpa [#allocation12], 0
    %37 = vsyncpa [#allocation15], 0
    %38 = vsyncpa [#allocation18], 0
    %39 = vsyncpa [#allocation21], 0
    %40 = vsyncpa [#allocation4], 0
    %s41 = scalar_lea.sflag [#allocation4], 1
    %42 = vsyncpa %s41, 0
    loop: start=0, step=1, limit=4
    $region2: #{tpu_custom_call.1} parent=1 // loop_pre_header
      _
    $region3: #{tpu_custom_call.1} parent=1 // loop_header
      %s44 = sphi 0, %s48
      %p45 = scmp.ge.s32.totalorder %s44, 4
      %s51 = sphi 0, %s63
      %s52 = sphi 0, %s59
      %s53 = sphi 0, %s51
      %s54 = sphi 0, %s52
      %s55 = sphi 0, %s53
      %s56 = sphi 0, %s54
      %s68 = sphi 0, %s70
      %s71 = sphi 0, %s68
      %s72 = sphi 0, %s71
      %s88 = sphi 0, %s72
      %s94 = sphi 0, %s96
      %s97 = sphi 0, %s94
      %s98 = sphi 0, %s97
      %s114 = sphi 0, %s98
      %s118 = sphi 0, %s118
      %s120 = sphi 0, %s118
      %s121 = sphi 0, %s120
      %s135 = sphi 0, %s121
      %s139 = sphi 0, %s139
      %s141 = sphi 0, %s139
      %s142 = sphi 0, %s141
      %s156 = sphi 0, %s142
      %s160 = sphi 0, %s160
      %s162 = sphi 0, %s160
      %s163 = sphi 0, %s162
      %s177 = sphi 0, %s163
      %s181 = sphi 0, %s181
      %s183 = sphi 0, %s181
      %s184 = sphi 0, %s183
      %s198 = sphi 0, %s184
      %s202 = sphi 0, %s202
      %s204 = sphi 0, %s202
      %s205 = sphi 0, %s204
      %s219 = sphi 0, %s205
      %s223 = sphi 0, %s223
      %s225 = sphi 0, %s223
      %s226 = sphi 0, %s225
      %s240 = sphi 0, %s226
      %s244 = sphi 0, %s244
      %s246 = sphi 0, %s244
      %s247 = sphi 0, %s246
      %s261 = sphi 0, %s247
      %s265 = sphi 0, %s265
      %s267 = sphi 0, %s265
      %s268 = sphi 0, %s267
      %s282 = sphi 0, %s268
      %s286 = sphi 0, %s286
      %s288 = sphi 0, %s286
      %s289 = sphi 0, %s288
      %s303 = sphi 0, %s289
      %s307 = sphi 0, %s307
      %s309 = sphi 0, %s307
      %s310 = sphi 0, %s309
      %s324 = sphi 0, %s310
      %s328 = sphi 0, %s328
      %s330 = sphi 0, %s328
      %s331 = sphi 0, %s330
      %s345 = sphi 0, %s331
      %s349 = sphi 0, %s349
      %s351 = sphi 0, %s349
      %s352 = sphi 0, %s351
      %s366 = sphi 0, %s352
      %s370 = sphi 0, %s370
      %s372 = sphi 0, %s370
      %s373 = sphi 0, %s372
      %s387 = sphi 0, %s373
      %s391 = sphi 0, %s391
      %s393 = sphi 0, %s391
      %s394 = sphi 0, %s393
      %s408 = sphi 0, %s394
      %s412 = sphi 0, %s412
      %s414 = sphi 0, %s412
      %s415 = sphi 0, %s414
      %s429 = sphi 0, %s415
      %s433 = sphi 0, %s433
      %s435 = sphi 0, %s433
      %s436 = sphi 0, %s435
      %s450 = sphi 0, %s436
      %s454 = sphi 0, %s454
      %s456 = sphi 0, %s454
      %s457 = sphi 0, %s456
      %s471 = sphi 0, %s457
      %s475 = sphi 0, %s475
      %s477 = sphi 0, %s475
      %s478 = sphi 0, %s477
      %s492 = sphi 0, %s478
      %s496 = sphi 0, %s496
      %s498 = sphi 0, %s496
      %s499 = sphi 0, %s498
      %s513 = sphi 0, %s499
      %s517 = sphi 0, %s517
      %s519 = sphi 0, %s517
      %s520 = sphi 0, %s519
      %s534 = sphi 0, %s520
      %s538 = sphi 0, %s538
      %s540 = sphi 0, %s538
      %s541 = sphi 0, %s540
      %s555 = sphi 0, %s541
      %s559 = sphi 0, %s559
      %s561 = sphi 0, %s559
      %s562 = sphi 0, %s561
      %s576 = sphi 0, %s562
      %s580 = sphi 0, %s580
      %s582 = sphi 0, %s580
      %s583 = sphi 0, %s582
      %s597 = sphi 0, %s583
      %s601 = sphi 0, %s601
      %s603 = sphi 0, %s601
      %s604 = sphi 0, %s603
      %s618 = sphi 0, %s604
      %s626 = sphi 0, %s628
      %s629 = sphi 0, %s626
      %s630 = sphi 0, %s629
      %s646 = sphi 0, %s630
    $region4: #{tpu_custom_call.1} parent=1 // loop_header_branch
      %47 = sbr.rel (%p45) target = $region8
    $region5: #{tpu_custom_call.1} parent=1 // loop_body
      %s49 = ssub.s32 %s44, 1
      %s50 = ssub.s32 %s44, 2
      %s57 = sadd.s32 1, %s52
      %p58 = scmp.ge.s32.totalorder %s57, 1
      %s59 = scalar_select %p58, 0, %s57
      %s60 = sadd.s32 1, %s51
      %s61 = scalar_select %p58, %s60, %s51
      %p62 = scmp.ge.s32.totalorder %s61, 2
      %s63 = scalar_select %p62, 0, %s61
      %s64 = ssub.s32 %s51, %s63
      %s65 = ssub.s32 %s52, %s59
      %s66 = sor.u32 %s64, %s65
      %p67 = scmp.eq.s32.totalorder %s66, 0
      %s69 = sadd.s32 %s68, 1
      %s70 = scalar_select %p67, %s68, %s69
      %p73 = pneg %p67
      %p74 = scmp.eq.s32.totalorder %s44, 1
      %p75 = por %p73, %p74
      %p76 = scmp.ne.s32.totalorder %s68, %s71
      %p77 = scmp.eq.s32.totalorder %s44, 0
      %p78 = por %p76, %p77
      %p79 = scmp.ne.s32.totalorder %s68, %s71
      %p80 = scmp.eq.s32.totalorder %s49, 1
      %p81 = por %p79, %p80
      %p82 = scmp.ne.s32.totalorder %s71, %s72
      %p83 = scmp.eq.s32.totalorder %s49, 0
      %p84 = por %p82, %p83
      %p85 = scmp.ne.s32.totalorder %s71, %s72
      %p86 = scmp.eq.s32.totalorder %s50, 1
      %p87 = por %p85, %p86
      %p89 = scmp.ne.s32.totalorder %s72, %s88
      %p90 = scmp.eq.s32.totalorder %s50, 0
      %p91 = por %p89, %p90
      %s92 = ssub.s32 %s51, %s63
      %p93 = scmp.eq.s32.totalorder %s92, 0
      %s95 = sadd.s32 %s94, 1
      %s96 = scalar_select %p93, %s94, %s95
      %p99 = pneg %p93
      %p100 = scmp.eq.s32.totalorder %s44, 1
      %p101 = por %p99, %p100
      %p102 = scmp.ne.s32.totalorder %s94, %s97
      %p103 = scmp.eq.s32.totalorder %s44, 0
      %p104 = por %p102, %p103
      %p105 = scmp.ne.s32.totalorder %s94, %s97
      %p106 = scmp.eq.s32.totalorder %s49, 1
      %p107 = por %p105, %p106
      %p108 = scmp.ne.s32.totalorder %s97, %s98
      %p109 = scmp.eq.s32.totalorder %s49, 0
      %p110 = por %p108, %p109
      %p111 = scmp.ne.s32.totalorder %s97, %s98
      %p112 = scmp.eq.s32.totalorder %s50, 1
      %p113 = por %p111, %p112
      %p115 = scmp.ne.s32.totalorder %s98, %s114
      %p116 = scmp.eq.s32.totalorder %s50, 0
      %p117 = por %p115, %p116
      %s119 = sadd.s32 %s118, 1
      %p122 = scmp.eq.s32.totalorder %s44, 1
      %p123 = scmp.ne.s32.totalorder %s118, %s120
      %p124 = scmp.eq.s32.totalorder %s44, 0
      %p125 = por %p123, %p124
      %p126 = scmp.ne.s32.totalorder %s118, %s120
      %p127 = scmp.eq.s32.totalorder %s49, 1
      %p128 = por %p126, %p127
      %p129 = scmp.ne.s32.totalorder %s120, %s121
      %p130 = scmp.eq.s32.totalorder %s49, 0
      %p131 = por %p129, %p130
      %p132 = scmp.ne.s32.totalorder %s120, %s121
      %p133 = scmp.eq.s32.totalorder %s50, 1
      %p134 = por %p132, %p133
      %p136 = scmp.ne.s32.totalorder %s121, %s135
      %p137 = scmp.eq.s32.totalorder %s50, 0
      %p138 = por %p136, %p137
      %s140 = sadd.s32 %s139, 1
      %p143 = scmp.eq.s32.totalorder %s44, 1
      %p144 = scmp.ne.s32.totalorder %s139, %s141
      %p145 = scmp.eq.s32.totalorder %s44, 0
      %p146 = por %p144, %p145
      %p147 = scmp.ne.s32.totalorder %s139, %s141
      %p148 = scmp.eq.s32.totalorder %s49, 1
      %p149 = por %p147, %p148
      %p150 = scmp.ne.s32.totalorder %s141, %s142
      %p151 = scmp.eq.s32.totalorder %s49, 0
      %p152 = por %p150, %p151
      %p153 = scmp.ne.s32.totalorder %s141, %s142
      %p154 = scmp.eq.s32.totalorder %s50, 1
      %p155 = por %p153, %p154
      %p157 = scmp.ne.s32.totalorder %s142, %s156
      %p158 = scmp.eq.s32.totalorder %s50, 0
      %p159 = por %p157, %p158
      %s161 = sadd.s32 %s160, 1
      %p164 = scmp.eq.s32.totalorder %s44, 1
      %p165 = scmp.ne.s32.totalorder %s160, %s162
      %p166 = scmp.eq.s32.totalorder %s44, 0
      %p167 = por %p165, %p166
      %p168 = scmp.ne.s32.totalorder %s160, %s162
      %p169 = scmp.eq.s32.totalorder %s49, 1
      %p170 = por %p168, %p169
      %p171 = scmp.ne.s32.totalorder %s162, %s163
      %p172 = scmp.eq.s32.totalorder %s49, 0
      %p173 = por %p171, %p172
      %p174 = scmp.ne.s32.totalorder %s162, %s163
      %p175 = scmp.eq.s32.totalorder %s50, 1
      %p176 = por %p174, %p175
      %p178 = scmp.ne.s32.totalorder %s163, %s177
      %p179 = scmp.eq.s32.totalorder %s50, 0
      %p180 = por %p178, %p179
      %s182 = sadd.s32 %s181, 1
      %p185 = scmp.eq.s32.totalorder %s44, 1
      %p186 = scmp.ne.s32.totalorder %s181, %s183
      %p187 = scmp.eq.s32.totalorder %s44, 0
      %p188 = por %p186, %p187
      %p189 = scmp.ne.s32.totalorder %s181, %s183
      %p190 = scmp.eq.s32.totalorder %s49, 1
      %p191 = por %p189, %p190
      %p192 = scmp.ne.s32.totalorder %s183, %s184
      %p193 = scmp.eq.s32.totalorder %s49, 0
      %p194 = por %p192, %p193
      %p195 = scmp.ne.s32.totalorder %s183, %s184
      %p196 = scmp.eq.s32.totalorder %s50, 1
      %p197 = por %p195, %p196
      %p199 = scmp.ne.s32.totalorder %s184, %s198
      %p200 = scmp.eq.s32.totalorder %s50, 0
      %p201 = por %p199, %p200
      %s203 = sadd.s32 %s202, 1
      %p206 = scmp.eq.s32.totalorder %s44, 1
      %p207 = scmp.ne.s32.totalorder %s202, %s204
      %p208 = scmp.eq.s32.totalorder %s44, 0
      %p209 = por %p207, %p208
      %p210 = scmp.ne.s32.totalorder %s202, %s204
      %p211 = scmp.eq.s32.totalorder %s49, 1
      %p212 = por %p210, %p211
      %p213 = scmp.ne.s32.totalorder %s204, %s205
      %p214 = scmp.eq.s32.totalorder %s49, 0
      %p215 = por %p213, %p214
      %p216 = scmp.ne.s32.totalorder %s204, %s205
      %p217 = scmp.eq.s32.totalorder %s50, 1
      %p218 = por %p216, %p217
      %p220 = scmp.ne.s32.totalorder %s205, %s219
      %p221 = scmp.eq.s32.totalorder %s50, 0
      %p222 = por %p220, %p221
      %s224 = sadd.s32 %s223, 1
      %p227 = scmp.eq.s32.totalorder %s44, 1
      %p228 = scmp.ne.s32.totalorder %s223, %s225
      %p229 = scmp.eq.s32.totalorder %s44, 0
      %p230 = por %p228, %p229
      %p231 = scmp.ne.s32.totalorder %s223, %s225
      %p232 = scmp.eq.s32.totalorder %s49, 1
      %p233 = por %p231, %p232
      %p234 = scmp.ne.s32.totalorder %s225, %s226
      %p235 = scmp.eq.s32.totalorder %s49, 0
      %p236 = por %p234, %p235
      %p237 = scmp.ne.s32.totalorder %s225, %s226
      %p238 = scmp.eq.s32.totalorder %s50, 1
      %p239 = por %p237, %p238
      %p241 = scmp.ne.s32.totalorder %s226, %s240
      %p242 = scmp.eq.s32.totalorder %s50, 0
      %p243 = por %p241, %p242
      %s245 = sadd.s32 %s244, 1
      %p248 = scmp.eq.s32.totalorder %s44, 1
      %p249 = scmp.ne.s32.totalorder %s244, %s246
      %p250 = scmp.eq.s32.totalorder %s44, 0
      %p251 = por %p249, %p250
      %p252 = scmp.ne.s32.totalorder %s244, %s246
      %p253 = scmp.eq.s32.totalorder %s49, 1
      %p254 = por %p252, %p253
      %p255 = scmp.ne.s32.totalorder %s246, %s247
      %p256 = scmp.eq.s32.totalorder %s49, 0
      %p257 = por %p255, %p256
      %p258 = scmp.ne.s32.totalorder %s246, %s247
      %p259 = scmp.eq.s32.totalorder %s50, 1
      %p260 = por %p258, %p259
      %p262 = scmp.ne.s32.totalorder %s247, %s261
      %p263 = scmp.eq.s32.totalorder %s50, 0
      %p264 = por %p262, %p263
      %s266 = sadd.s32 %s265, 1
      %p269 = scmp.eq.s32.totalorder %s44, 1
      %p270 = scmp.ne.s32.totalorder %s265, %s267
      %p271 = scmp.eq.s32.totalorder %s44, 0
      %p272 = por %p270, %p271
      %p273 = scmp.ne.s32.totalorder %s265, %s267
      %p274 = scmp.eq.s32.totalorder %s49, 1
      %p275 = por %p273, %p274
      %p276 = scmp.ne.s32.totalorder %s267, %s268
      %p277 = scmp.eq.s32.totalorder %s49, 0
      %p278 = por %p276, %p277
      %p279 = scmp.ne.s32.totalorder %s267, %s268
      %p280 = scmp.eq.s32.totalorder %s50, 1
      %p281 = por %p279, %p280
      %p283 = scmp.ne.s32.totalorder %s268, %s282
      %p284 = scmp.eq.s32.totalorder %s50, 0
      %p285 = por %p283, %p284
      %s287 = sadd.s32 %s286, 1
      %p290 = scmp.eq.s32.totalorder %s44, 1
      %p291 = scmp.ne.s32.totalorder %s286, %s288
      %p292 = scmp.eq.s32.totalorder %s44, 0
      %p293 = por %p291, %p292
      %p294 = scmp.ne.s32.totalorder %s286, %s288
      %p295 = scmp.eq.s32.totalorder %s49, 1
      %p296 = por %p294, %p295
      %p297 = scmp.ne.s32.totalorder %s288, %s289
      %p298 = scmp.eq.s32.totalorder %s49, 0
      %p299 = por %p297, %p298
      %p300 = scmp.ne.s32.totalorder %s288, %s289
      %p301 = scmp.eq.s32.totalorder %s50, 1
      %p302 = por %p300, %p301
      %p304 = scmp.ne.s32.totalorder %s289, %s303
      %p305 = scmp.eq.s32.totalorder %s50, 0
      %p306 = por %p304, %p305
      %s308 = sadd.s32 %s307, 1
      %p311 = scmp.eq.s32.totalorder %s44, 1
      %p312 = scmp.ne.s32.totalorder %s307, %s309
      %p313 = scmp.eq.s32.totalorder %s44, 0
      %p314 = por %p312, %p313
      %p315 = scmp.ne.s32.totalorder %s307, %s309
      %p316 = scmp.eq.s32.totalorder %s49, 1
      %p317 = por %p315, %p316
      %p318 = scmp.ne.s32.totalorder %s309, %s310
      %p319 = scmp.eq.s32.totalorder %s49, 0
      %p320 = por %p318, %p319
      %p321 = scmp.ne.s32.totalorder %s309, %s310
      %p322 = scmp.eq.s32.totalorder %s50, 1
      %p323 = por %p321, %p322
      %p325 = scmp.ne.s32.totalorder %s310, %s324
      %p326 = scmp.eq.s32.totalorder %s50, 0
      %p327 = por %p325, %p326
      %s329 = sadd.s32 %s328, 1
      %p332 = scmp.eq.s32.totalorder %s44, 1
      %p333 = scmp.ne.s32.totalorder %s328, %s330
      %p334 = scmp.eq.s32.totalorder %s44, 0
      %p335 = por %p333, %p334
      %p336 = scmp.ne.s32.totalorder %s328, %s330
      %p337 = scmp.eq.s32.totalorder %s49, 1
      %p338 = por %p336, %p337
      %p339 = scmp.ne.s32.totalorder %s330, %s331
      %p340 = scmp.eq.s32.totalorder %s49, 0
      %p341 = por %p339, %p340
      %p342 = scmp.ne.s32.totalorder %s330, %s331
      %p343 = scmp.eq.s32.totalorder %s50, 1
      %p344 = por %p342, %p343
      %p346 = scmp.ne.s32.totalorder %s331, %s345
      %p347 = scmp.eq.s32.totalorder %s50, 0
      %p348 = por %p346, %p347
      %s350 = sadd.s32 %s349, 1
      %p353 = scmp.eq.s32.totalorder %s44, 1
      %p354 = scmp.ne.s32.totalorder %s349, %s351
      %p355 = scmp.eq.s32.totalorder %s44, 0
      %p356 = por %p354, %p355
      %p357 = scmp.ne.s32.totalorder %s349, %s351
      %p358 = scmp.eq.s32.totalorder %s49, 1
      %p359 = por %p357, %p358
      %p360 = scmp.ne.s32.totalorder %s351, %s352
      %p361 = scmp.eq.s32.totalorder %s49, 0
      %p362 = por %p360, %p361
      %p363 = scmp.ne.s32.totalorder %s351, %s352
      %p364 = scmp.eq.s32.totalorder %s50, 1
      %p365 = por %p363, %p364
      %p367 = scmp.ne.s32.totalorder %s352, %s366
      %p368 = scmp.eq.s32.totalorder %s50, 0
      %p369 = por %p367, %p368
      %s371 = sadd.s32 %s370, 1
      %p374 = scmp.eq.s32.totalorder %s44, 1
      %p375 = scmp.ne.s32.totalorder %s370, %s372
      %p376 = scmp.eq.s32.totalorder %s44, 0
      %p377 = por %p375, %p376
      %p378 = scmp.ne.s32.totalorder %s370, %s372
      %p379 = scmp.eq.s32.totalorder %s49, 1
      %p380 = por %p378, %p379
      %p381 = scmp.ne.s32.totalorder %s372, %s373
      %p382 = scmp.eq.s32.totalorder %s49, 0
      %p383 = por %p381, %p382
      %p384 = scmp.ne.s32.totalorder %s372, %s373
      %p385 = scmp.eq.s32.totalorder %s50, 1
      %p386 = por %p384, %p385
      %p388 = scmp.ne.s32.totalorder %s373, %s387
      %p389 = scmp.eq.s32.totalorder %s50, 0
      %p390 = por %p388, %p389
      %s392 = sadd.s32 %s391, 1
      %p395 = scmp.eq.s32.totalorder %s44, 1
      %p396 = scmp.ne.s32.totalorder %s391, %s393
      %p397 = scmp.eq.s32.totalorder %s44, 0
      %p398 = por %p396, %p397
      %p399 = scmp.ne.s32.totalorder %s391, %s393
      %p400 = scmp.eq.s32.totalorder %s49, 1
      %p401 = por %p399, %p400
      %p402 = scmp.ne.s32.totalorder %s393, %s394
      %p403 = scmp.eq.s32.totalorder %s49, 0
      %p404 = por %p402, %p403
      %p405 = scmp.ne.s32.totalorder %s393, %s394
      %p406 = scmp.eq.s32.totalorder %s50, 1
      %p407 = por %p405, %p406
      %p409 = scmp.ne.s32.totalorder %s394, %s408
      %p410 = scmp.eq.s32.totalorder %s50, 0
      %p411 = por %p409, %p410
      %s413 = sadd.s32 %s412, 1
      %p416 = scmp.eq.s32.totalorder %s44, 1
      %p417 = scmp.ne.s32.totalorder %s412, %s414
      %p418 = scmp.eq.s32.totalorder %s44, 0
      %p419 = por %p417, %p418
      %p420 = scmp.ne.s32.totalorder %s412, %s414
      %p421 = scmp.eq.s32.totalorder %s49, 1
      %p422 = por %p420, %p421
      %p423 = scmp.ne.s32.totalorder %s414, %s415
      %p424 = scmp.eq.s32.totalorder %s49, 0
      %p425 = por %p423, %p424
      %p426 = scmp.ne.s32.totalorder %s414, %s415
      %p427 = scmp.eq.s32.totalorder %s50, 1
      %p428 = por %p426, %p427
      %p430 = scmp.ne.s32.totalorder %s415, %s429
      %p431 = scmp.eq.s32.totalorder %s50, 0
      %p432 = por %p430, %p431
      %s434 = sadd.s32 %s433, 1
      %p437 = scmp.eq.s32.totalorder %s44, 1
      %p438 = scmp.ne.s32.totalorder %s433, %s435
      %p439 = scmp.eq.s32.totalorder %s44, 0
      %p440 = por %p438, %p439
      %p441 = scmp.ne.s32.totalorder %s433, %s435
      %p442 = scmp.eq.s32.totalorder %s49, 1
      %p443 = por %p441, %p442
      %p444 = scmp.ne.s32.totalorder %s435, %s436
      %p445 = scmp.eq.s32.totalorder %s49, 0
      %p446 = por %p444, %p445
      %p447 = scmp.ne.s32.totalorder %s435, %s436
      %p448 = scmp.eq.s32.totalorder %s50, 1
      %p449 = por %p447, %p448
      %p451 = scmp.ne.s32.totalorder %s436, %s450
      %p452 = scmp.eq.s32.totalorder %s50, 0
      %p453 = por %p451, %p452
      %s455 = sadd.s32 %s454, 1
      %p458 = scmp.eq.s32.totalorder %s44, 1
      %p459 = scmp.ne.s32.totalorder %s454, %s456
      %p460 = scmp.eq.s32.totalorder %s44, 0
      %p461 = por %p459, %p460
      %p462 = scmp.ne.s32.totalorder %s454, %s456
      %p463 = scmp.eq.s32.totalorder %s49, 1
      %p464 = por %p462, %p463
      %p465 = scmp.ne.s32.totalorder %s456, %s457
      %p466 = scmp.eq.s32.totalorder %s49, 0
      %p467 = por %p465, %p466
      %p468 = scmp.ne.s32.totalorder %s456, %s457
      %p469 = scmp.eq.s32.totalorder %s50, 1
      %p470 = por %p468, %p469
      %p472 = scmp.ne.s32.totalorder %s457, %s471
      %p473 = scmp.eq.s32.totalorder %s50, 0
      %p474 = por %p472, %p473
      %s476 = sadd.s32 %s475, 1
      %p479 = scmp.eq.s32.totalorder %s44, 1
      %p480 = scmp.ne.s32.totalorder %s475, %s477
      %p481 = scmp.eq.s32.totalorder %s44, 0
      %p482 = por %p480, %p481
      %p483 = scmp.ne.s32.totalorder %s475, %s477
      %p484 = scmp.eq.s32.totalorder %s49, 1
      %p485 = por %p483, %p484
      %p486 = scmp.ne.s32.totalorder %s477, %s478
      %p487 = scmp.eq.s32.totalorder %s49, 0
      %p488 = por %p486, %p487
      %p489 = scmp.ne.s32.totalorder %s477, %s478
      %p490 = scmp.eq.s32.totalorder %s50, 1
      %p491 = por %p489, %p490
      %p493 = scmp.ne.s32.totalorder %s478, %s492
      %p494 = scmp.eq.s32.totalorder %s50, 0
      %p495 = por %p493, %p494
      %s497 = sadd.s32 %s496, 1
      %p500 = scmp.eq.s32.totalorder %s44, 1
      %p501 = scmp.ne.s32.totalorder %s496, %s498
      %p502 = scmp.eq.s32.totalorder %s44, 0
      %p503 = por %p501, %p502
      %p504 = scmp.ne.s32.totalorder %s496, %s498
      %p505 = scmp.eq.s32.totalorder %s49, 1
      %p506 = por %p504, %p505
      %p507 = scmp.ne.s32.totalorder %s498, %s499
      %p508 = scmp.eq.s32.totalorder %s49, 0
      %p509 = por %p507, %p508
      %p510 = scmp.ne.s32.totalorder %s498, %s499
      %p511 = scmp.eq.s32.totalorder %s50, 1
      %p512 = por %p510, %p511
      %p514 = scmp.ne.s32.totalorder %s499, %s513
      %p515 = scmp.eq.s32.totalorder %s50, 0
      %p516 = por %p514, %p515
      %s518 = sadd.s32 %s517, 1
      %p521 = scmp.eq.s32.totalorder %s44, 1
      %p522 = scmp.ne.s32.totalorder %s517, %s519
      %p523 = scmp.eq.s32.totalorder %s44, 0
      %p524 = por %p522, %p523
      %p525 = scmp.ne.s32.totalorder %s517, %s519
      %p526 = scmp.eq.s32.totalorder %s49, 1
      %p527 = por %p525, %p526
      %p528 = scmp.ne.s32.totalorder %s519, %s520
      %p529 = scmp.eq.s32.totalorder %s49, 0
      %p530 = por %p528, %p529
      %p531 = scmp.ne.s32.totalorder %s519, %s520
      %p532 = scmp.eq.s32.totalorder %s50, 1
      %p533 = por %p531, %p532
      %p535 = scmp.ne.s32.totalorder %s520, %s534
      %p536 = scmp.eq.s32.totalorder %s50, 0
      %p537 = por %p535, %p536
      %s539 = sadd.s32 %s538, 1
      %p542 = scmp.eq.s32.totalorder %s44, 1
      %p543 = scmp.ne.s32.totalorder %s538, %s540
      %p544 = scmp.eq.s32.totalorder %s44, 0
      %p545 = por %p543, %p544
      %p546 = scmp.ne.s32.totalorder %s538, %s540
      %p547 = scmp.eq.s32.totalorder %s49, 1
      %p548 = por %p546, %p547
      %p549 = scmp.ne.s32.totalorder %s540, %s541
      %p550 = scmp.eq.s32.totalorder %s49, 0
      %p551 = por %p549, %p550
      %p552 = scmp.ne.s32.totalorder %s540, %s541
      %p553 = scmp.eq.s32.totalorder %s50, 1
      %p554 = por %p552, %p553
      %p556 = scmp.ne.s32.totalorder %s541, %s555
      %p557 = scmp.eq.s32.totalorder %s50, 0
      %p558 = por %p556, %p557
      %s560 = sadd.s32 %s559, 1
      %p563 = scmp.eq.s32.totalorder %s44, 1
      %p564 = scmp.ne.s32.totalorder %s559, %s561
      %p565 = scmp.eq.s32.totalorder %s44, 0
      %p566 = por %p564, %p565
      %p567 = scmp.ne.s32.totalorder %s559, %s561
      %p568 = scmp.eq.s32.totalorder %s49, 1
      %p569 = por %p567, %p568
      %p570 = scmp.ne.s32.totalorder %s561, %s562
      %p571 = scmp.eq.s32.totalorder %s49, 0
      %p572 = por %p570, %p571
      %p573 = scmp.ne.s32.totalorder %s561, %s562
      %p574 = scmp.eq.s32.totalorder %s50, 1
      %p575 = por %p573, %p574
      %p577 = scmp.ne.s32.totalorder %s562, %s576
      %p578 = scmp.eq.s32.totalorder %s50, 0
      %p579 = por %p577, %p578
      %s581 = sadd.s32 %s580, 1
      %p584 = scmp.eq.s32.totalorder %s44, 1
      %p585 = scmp.ne.s32.totalorder %s580, %s582
      %p586 = scmp.eq.s32.totalorder %s44, 0
      %p587 = por %p585, %p586
      %p588 = scmp.ne.s32.totalorder %s580, %s582
      %p589 = scmp.eq.s32.totalorder %s49, 1
      %p590 = por %p588, %p589
      %p591 = scmp.ne.s32.totalorder %s582, %s583
      %p592 = scmp.eq.s32.totalorder %s49, 0
      %p593 = por %p591, %p592
      %p594 = scmp.ne.s32.totalorder %s582, %s583
      %p595 = scmp.eq.s32.totalorder %s50, 1
      %p596 = por %p594, %p595
      %p598 = scmp.ne.s32.totalorder %s583, %s597
      %p599 = scmp.eq.s32.totalorder %s50, 0
      %p600 = por %p598, %p599
      %s602 = sadd.s32 %s601, 1
      %p605 = scmp.eq.s32.totalorder %s44, 1
      %p606 = scmp.ne.s32.totalorder %s601, %s603
      %p607 = scmp.eq.s32.totalorder %s44, 0
      %p608 = por %p606, %p607
      %p609 = scmp.ne.s32.totalorder %s601, %s603
      %p610 = scmp.eq.s32.totalorder %s49, 1
      %p611 = por %p609, %p610
      %p612 = scmp.ne.s32.totalorder %s603, %s604
      %p613 = scmp.eq.s32.totalorder %s49, 0
      %p614 = por %p612, %p613
      %p615 = scmp.ne.s32.totalorder %s603, %s604
      %p616 = scmp.eq.s32.totalorder %s50, 1
      %p617 = por %p615, %p616
      %p619 = scmp.ne.s32.totalorder %s604, %s618
      %p620 = scmp.eq.s32.totalorder %s50, 0
      %p621 = por %p619, %p620
      %s622 = ssub.s32 %s51, %s63
      %s623 = ssub.s32 %s52, %s59
      %s624 = sor.u32 %s622, %s623
      %p625 = scmp.eq.s32.totalorder %s624, 0
      %s627 = sadd.s32 %s626, 1
      %s628 = scalar_select %p625, %s626, %s627
      %p631 = pneg %p625
      %p632 = scmp.eq.s32.totalorder %s44, 1
      %p633 = por %p631, %p632
      %p634 = scmp.ne.s32.totalorder %s626, %s629
      %p635 = scmp.eq.s32.totalorder %s44, 0
      %p636 = por %p634, %p635
      %p637 = scmp.ne.s32.totalorder %s626, %s629
      %p638 = scmp.eq.s32.totalorder %s49, 1
      %p639 = por %p637, %p638
      %p640 = scmp.ne.s32.totalorder %s629, %s630
      %p641 = scmp.eq.s32.totalorder %s49, 0
      %p642 = por %p640, %p641
      %p643 = scmp.ne.s32.totalorder %s629, %s630
      %p644 = scmp.eq.s32.totalorder %s50, 1
      %p645 = por %p643, %p644
      %p647 = scmp.ne.s32.totalorder %s630, %s646
      %p648 = scmp.eq.s32.totalorder %s50, 0
      %p649 = por %p647, %p648
      %p650 = scmp.le.s32.totalorder 1, %s44
      %p651 = scmp.lt.s32.totalorder %s44, 3
      %p652 = pnand %p650, %p651
      %p653 = pneg %p652
      // Predicated region
      $region9: #{tpu_custom_call.1} parent=5 // pred_check
        _
      $region10: #{tpu_custom_call.1} parent=5 // pred_check_branch
        %655 = sbr.rel (%p652) target = $region12
      $region11: #{tpu_custom_call.1} parent=5 // pred_region
        %s656 = ssub.s32 %s44, 1
        // Predicated region
        $region13: #{tpu_custom_call.1} parent=11 // pred_check
          %p657 = pneg %p131
        $region14: #{tpu_custom_call.1} parent=11 // pred_check_branch
          %659 = sbr.rel (%p657) target = $region16
        $region15: #{tpu_custom_call.1} parent=11 // pred_region
          _
        $region16: #{tpu_custom_call.1} parent=11 // pred_fallthru
          _
        // Predicated region
        $region17: #{tpu_custom_call.1} parent=11 // pred_check
          %p660 = pneg %p152
        $region18: #{tpu_custom_call.1} parent=11 // pred_check_branch
          %662 = sbr.rel (%p660) target = $region20
        $region19: #{tpu_custom_call.1} parent=11 // pred_region
          _
        $region20: #{tpu_custom_call.1} parent=11 // pred_fallthru
          _
        // Predicated region
        $region21: #{tpu_custom_call.1} parent=11 // pred_check
          %p663 = pneg %p173
        $region22: #{tpu_custom_call.1} parent=11 // pred_check_branch
          %665 = sbr.rel (%p663) target = $region24
        $region23: #{tpu_custom_call.1} parent=11 // pred_region
          _
        $region24: #{tpu_custom_call.1} parent=11 // pred_fallthru
          _
        // Predicated region
        $region25: #{tpu_custom_call.1} parent=11 // pred_check
          %p666 = pneg %p194
        $region26: #{tpu_custom_call.1} parent=11 // pred_check_branch
          %668 = sbr.rel (%p666) target = $region28
        $region27: #{tpu_custom_call.1} parent=11 // pred_region
          _
        $region28: #{tpu_custom_call.1} parent=11 // pred_fallthru
          _
        // Predicated region
        $region29: #{tpu_custom_call.1} parent=11 // pred_check
          %p669 = pneg %p215
        $region30: #{tpu_custom_call.1} parent=11 // pred_check_branch
          %671 = sbr.rel (%p669) target = $region32
        $region31: #{tpu_custom_call.1} parent=11 // pred_region
          %s673 = ssub.s32 512, 512
          %674 = vsyncadd [#allocation6], %s673
          %s675 = sshll.u32 [#allocation5], 4
          %s676 = int_to_ptr.vmem [resolvable:$true] %s675
          %681 = dma.hbm_to_vmem [thread:$0]  %s6, 512, %s676, [#allocation6], 64, 64, 4
        $region32: #{tpu_custom_call.1} parent=11 // pred_fallthru
          _
        // Predicated region
        $region33: #{tpu_custom_call.1} parent=11 // pred_check
          %p682 = pneg %p236
        $region34: #{tpu_custom_call.1} parent=11 // pred_check_branch
          %684 = sbr.rel (%p682) target = $region36
        $region35: #{tpu_custom_call.1} parent=11 // pred_region
          _
        $region36: #{tpu_custom_call.1} parent=11 // pred_fallthru
          _
        // Predicated region
        $region37: #{tpu_custom_call.1} parent=11 // pred_check
          %p685 = pneg %p257
        $region38: #{tpu_custom_call.1} parent=11 // pred_check_branch
          %687 = sbr.rel (%p685) target = $region40
        $region39: #{tpu_custom_call.1} parent=11 // pred_region
          _
        $region40: #{tpu_custom_call.1} parent=11 // pred_fallthru
          _
        // Predicated region
        $region41: #{tpu_custom_call.1} parent=11 // pred_check
          %p688 = pneg %p278
        $region42: #{tpu_custom_call.1} parent=11 // pred_check_branch
          %690 = sbr.rel (%p688) target = $region44
        $region43: #{tpu_custom_call.1} parent=11 // pred_region
          _
        $region44: #{tpu_custom_call.1} parent=11 // pred_fallthru
          _
        // Predicated region
        $region45: #{tpu_custom_call.1} parent=11 // pred_check
          %p691 = pneg %p299
        $region46: #{tpu_custom_call.1} parent=11 // pred_check_branch
          %693 = sbr.rel (%p691) target = $region48
        $region47: #{tpu_custom_call.1} parent=11 // pred_region
          %s695 = ssub.s32 1024, 1024
          %696 = vsyncadd [#allocation6], %s695
          %s697 = sshll.u32 [#allocation7], 4
          %s698 = int_to_ptr.vmem [resolvable:$true] %s697
          %703 = dma.hbm_to_vmem [thread:$0]  %s10, 1024, %s698, [#allocation6], 64, 64, 4
        $region48: #{tpu_custom_call.1} parent=11 // pred_fallthru
          _
        // Predicated region
        $region49: #{tpu_custom_call.1} parent=11 // pred_check
          %p704 = pneg %p320
        $region50: #{tpu_custom_call.1} parent=11 // pred_check_branch
          %706 = sbr.rel (%p704) target = $region52
        $region51: #{tpu_custom_call.1} parent=11 // pred_region
          _
        $region52: #{tpu_custom_call.1} parent=11 // pred_fallthru
          _
        // Predicated region
        $region53: #{tpu_custom_call.1} parent=11 // pred_check
          %p707 = pneg %p341
        $region54: #{tpu_custom_call.1} parent=11 // pred_check_branch
          %709 = sbr.rel (%p707) target = $region56
        $region55: #{tpu_custom_call.1} parent=11 // pred_region
          _
        $region56: #{tpu_custom_call.1} parent=11 // pred_fallthru
          _
        // Predicated region
        $region57: #{tpu_custom_call.1} parent=11 // pred_check
          %p710 = pneg %p362
        $region58: #{tpu_custom_call.1} parent=11 // pred_check_branch
          %712 = sbr.rel (%p710) target = $region60
        $region59: #{tpu_custom_call.1} parent=11 // pred_region
          %s714 = ssub.s32 16, 16
          %715 = vsyncadd [#allocation9], %s714
          %s717 = sshll.u32 [#allocation8], 4
          %s718 = int_to_ptr.vmem [resolvable:$true] %s717
          %720 = dma.hbm_to_vmem [thread:$0]  %s13, 16, %s718, [#allocation9]
        $region60: #{tpu_custom_call.1} parent=11 // pred_fallthru
          _
        // Predicated region
        $region61: #{tpu_custom_call.1} parent=11 // pred_check
          %p721 = pneg %p383
        $region62: #{tpu_custom_call.1} parent=11 // pred_check_branch
          %723 = sbr.rel (%p721) target = $region64
        $region63: #{tpu_custom_call.1} parent=11 // pred_region
          _
        $region64: #{tpu_custom_call.1} parent=11 // pred_fallthru
          _
        // Predicated region
        $region65: #{tpu_custom_call.1} parent=11 // pred_check
          %p724 = pneg %p404
        $region66: #{tpu_custom_call.1} parent=11 // pred_check_branch
          %726 = sbr.rel (%p724) target = $region68
        $region67: #{tpu_custom_call.1} parent=11 // pred_region
          %s728 = ssub.s32 16, 16
          %729 = vsyncadd [#allocation9], %s728
          %s731 = sshll.u32 [#allocation10], 4
          %s732 = int_to_ptr.vmem [resolvable:$true] %s731
          %734 = dma.hbm_to_vmem [thread:$0]  %s15, 16, %s732, [#allocation9]
        $region68: #{tpu_custom_call.1} parent=11 // pred_fallthru
          _
        // Predicated region
        $region69: #{tpu_custom_call.1} parent=11 // pred_check
          %p735 = pneg %p425
        $region70: #{tpu_custom_call.1} parent=11 // pred_check_branch
          %737 = sbr.rel (%p735) target = $region72
        $region71: #{tpu_custom_call.1} parent=11 // pred_region
          %s739 = ssub.s32 16, 16
          %740 = vsyncadd [#allocation12], %s739
          %s742 = sshll.u32 [#allocation11], 4
          %s743 = int_to_ptr.vmem [resolvable:$true] %s742
          %745 = dma.hbm_to_vmem [thread:$0]  %s16, 16, %s743, [#allocation12]
        $region72: #{tpu_custom_call.1} parent=11 // pred_fallthru
          _
        // Predicated region
        $region73: #{tpu_custom_call.1} parent=11 // pred_check
          %p746 = pneg %p446
        $region74: #{tpu_custom_call.1} parent=11 // pred_check_branch
          %748 = sbr.rel (%p746) target = $region76
        $region75: #{tpu_custom_call.1} parent=11 // pred_region
          %s750 = ssub.s32 16, 16
          %751 = vsyncadd [#allocation12], %s750
          %s753 = sshll.u32 [#allocation13], 4
          %s754 = int_to_ptr.vmem [resolvable:$true] %s753
          %756 = dma.hbm_to_vmem [thread:$0]  %s17, 16, %s754, [#allocation12]
        $region76: #{tpu_custom_call.1} parent=11 // pred_fallthru
          _
        // Predicated region
        $region77: #{tpu_custom_call.1} parent=11 // pred_check
          %p757 = pneg %p467
        $region78: #{tpu_custom_call.1} parent=11 // pred_check_branch
          %759 = sbr.rel (%p757) target = $region80
        $region79: #{tpu_custom_call.1} parent=11 // pred_region
          %s761 = ssub.s32 1024, 1024
          %762 = vsyncadd [#allocation15], %s761
          %s763 = sshll.u32 [#allocation14], 4
          %s764 = int_to_ptr.vmem [resolvable:$true] %s763
          %769 = dma.hbm_to_vmem [thread:$0]  %s18, 1024, %s764, [#allocation15], 64, 64, 4
        $region80: #{tpu_custom_call.1} parent=11 // pred_fallthru
          _
        // Predicated region
        $region81: #{tpu_custom_call.1} parent=11 // pred_check
          %p770 = pneg %p488
        $region82: #{tpu_custom_call.1} parent=11 // pred_check_branch
          %772 = sbr.rel (%p770) target = $region84
        $region83: #{tpu_custom_call.1} parent=11 // pred_region
          %s774 = ssub.s32 16, 16
          %775 = vsyncadd [#allocation15], %s774
          %s777 = sshll.u32 [#allocation16], 4
          %s778 = int_to_ptr.vmem [resolvable:$true] %s777
          %780 = dma.hbm_to_vmem [thread:$0]  %s19, 16, %s778, [#allocation15]
        $region84: #{tpu_custom_call.1} parent=11 // pred_fallthru
          _
        // Predicated region
        $region85: #{tpu_custom_call.1} parent=11 // pred_check
          %p781 = pneg %p509
        $region86: #{tpu_custom_call.1} parent=11 // pred_check_branch
          %783 = sbr.rel (%p781) target = $region88
        $region87: #{tpu_custom_call.1} parent=11 // pred_region
          %s785 = ssub.s32 512, 512
          %786 = vsyncadd [#allocation18], %s785
          %s787 = sshll.u32 [#allocation17], 4
          %s788 = int_to_ptr.vmem [resolvable:$true] %s787
          %793 = dma.hbm_to_vmem [thread:$0]  %s20, 512, %s788, [#allocation18], 64, 64, 4
        $region88: #{tpu_custom_call.1} parent=11 // pred_fallthru
          _
        // Predicated region
        $region89: #{tpu_custom_call.1} parent=11 // pred_check
          %p794 = pneg %p530
        $region90: #{tpu_custom_call.1} parent=11 // pred_check_branch
          %796 = sbr.rel (%p794) target = $region92
        $region91: #{tpu_custom_call.1} parent=11 // pred_region
          %s798 = ssub.s32 16, 16
          %799 = vsyncadd [#allocation18], %s798
          %s801 = sshll.u32 [#allocation19], 4
          %s802 = int_to_ptr.vmem [resolvable:$true] %s801
          %804 = dma.hbm_to_vmem [thread:$0]  %s21, 16, %s802, [#allocation18]
        $region92: #{tpu_custom_call.1} parent=11 // pred_fallthru
          _
        // Predicated region
        $region93: #{tpu_custom_call.1} parent=11 // pred_check
          %p805 = pneg %p551
        $region94: #{tpu_custom_call.1} parent=11 // pred_check_branch
          %807 = sbr.rel (%p805) target = $region96
        $region95: #{tpu_custom_call.1} parent=11 // pred_region
          %s809 = ssub.s32 16, 16
          %810 = vsyncadd [#allocation21], %s809
          %s812 = sshll.u32 [#allocation20], 4
          %s813 = int_to_ptr.vmem [resolvable:$true] %s812
          %815 = dma.hbm_to_vmem [thread:$0]  %s22, 16, %s813, [#allocation21]
        $region96: #{tpu_custom_call.1} parent=11 // pred_fallthru
          _
        // Predicated region
        $region97: #{tpu_custom_call.1} parent=11 // pred_check
          %p816 = pneg %p572
        $region98: #{tpu_custom_call.1} parent=11 // pred_check_branch
          %818 = sbr.rel (%p816) target = $region100
        $region99: #{tpu_custom_call.1} parent=11 // pred_region
          %s820 = ssub.s32 16, 16
          %821 = vsyncadd [#allocation21], %s820
          %s823 = sshll.u32 [#allocation22], 4
          %s824 = int_to_ptr.vmem [resolvable:$true] %s823
          %826 = dma.hbm_to_vmem [thread:$0]  %s23, 16, %s824, [#allocation21]
        $region100: #{tpu_custom_call.1} parent=11 // pred_fallthru
          _
        // Predicated region
        $region101: #{tpu_custom_call.1} parent=11 // pred_check
          %p827 = pneg %p593
        $region102: #{tpu_custom_call.1} parent=11 // pred_check_branch
          %829 = sbr.rel (%p827) target = $region104
        $region103: #{tpu_custom_call.1} parent=11 // pred_region
          _
        $region104: #{tpu_custom_call.1} parent=11 // pred_fallthru
          _
        // Predicated region
        $region105: #{tpu_custom_call.1} parent=11 // pred_check
          %p830 = pneg %p614
        $region106: #{tpu_custom_call.1} parent=11 // pred_check_branch
          %832 = sbr.rel (%p830) target = $region108
        $region107: #{tpu_custom_call.1} parent=11 // pred_region
          _
        $region108: #{tpu_custom_call.1} parent=11 // pred_fallthru
          _
      $region12: #{tpu_custom_call.1} parent=5 // pred_fallthru
        _
      %p833 = scmp.lt.s32.totalorder %s44, 2
      // Predicated region
      $region109: #{tpu_custom_call.1} parent=5 // pred_check
        %p834 = pneg %p833
      $region110: #{tpu_custom_call.1} parent=5 // pred_check_branch
        %836 = sbr.rel (%p834) target = $region112
      $region111: #{tpu_custom_call.1} parent=5 // pred_region
        // Predicated region
        $region113: #{tpu_custom_call.1} parent=111 // pred_check
          %p837 = pneg %p78
        $region114: #{tpu_custom_call.1} parent=111 // pred_check_branch
          %839 = sbr.rel (%p837) target = $region116
        $region115: #{tpu_custom_call.1} parent=111 // pred_region
          %p840 = scmp.lt.s32.totalorder %s51, 1
          %s841 = scalar_select %p840, %s51, 1
          %p842 = scmp.lt.s32.totalorder %s52, 0
          %s843 = scalar_select %p842, %s52, 0
          %s844 = sadd.s32 %s843, %s841
          %s845 = smul.addr %s844, 8
          %s846 = scalar_lea.vmem %s0, %s845
        $region116: #{tpu_custom_call.1} parent=111 // pred_fallthru
          _
        // Predicated region
        $region117: #{tpu_custom_call.1} parent=111 // pred_check
          %p847 = pneg %p104
        $region118: #{tpu_custom_call.1} parent=111 // pred_check_branch
          %849 = sbr.rel (%p847) target = $region120
        $region119: #{tpu_custom_call.1} parent=111 // pred_region
          %s850 = sand.u32 %s94, 1
          %s851 = scalar_lea.sflag [#allocation3], %s850
          %s852 = sand.u32 %s94, 1
          %s853 = smul.addr %s852, 8
          %s854 = scalar_lea.vmem [#allocation2], %s853
          %s856 = ssub.s32 128, 128
          %857 = vsyncadd %s851, %s856
          %s858 = smul.addr %s51, 128
          %s859 = scalar_lea.hbm %s1, %s858
          %s861 = sshll.u32 %s854, 4
          %s862 = int_to_ptr.vmem [resolvable:$true] %s861
          %864 = dma.hbm_to_vmem [thread:$0]  %s859, 128, %s862, %s851
        $region120: #{tpu_custom_call.1} parent=111 // pred_fallthru
          _
      $region112: #{tpu_custom_call.1} parent=5 // pred_fallthru
        _
      %p865 = scmp.le.s32.totalorder 1, %s44
      %p866 = scmp.lt.s32.totalorder %s44, 3
      %p867 = pnand %p865, %p866
      %p868 = pneg %p867
      // Predicated region
      $region121: #{tpu_custom_call.1} parent=5 // pred_check
        _
      $region122: #{tpu_custom_call.1} parent=5 // pred_check_branch
        %870 = sbr.rel (%p867) target = $region124
      $region123: #{tpu_custom_call.1} parent=5 // pred_region
        %s871 = ssub.s32 %s44, 1
        %s872 = sand.u32 %s97, 1
        %s873 = scalar_lea.sflag [#allocation3], %s872
        %s874 = sand.u32 %s97, 1
        %s875 = smul.addr %s874, 8
        %s876 = scalar_lea.vmem [#allocation2], %s875
        // Predicated region
        $region125: #{tpu_custom_call.1} parent=123 // pred_check
          %p877 = pneg %p110
        $region126: #{tpu_custom_call.1} parent=123 // pred_check_branch
          %879 = sbr.rel (%p877) target = $region128
        $region127: #{tpu_custom_call.1} parent=123 // pred_region
          %880 = dma.done %s873, 128
        $region128: #{tpu_custom_call.1} parent=123 // pred_fallthru
          _
        // Predicated region
        $region129: #{tpu_custom_call.1} parent=123 // pred_check
          %p881 = pneg %p215
        $region130: #{tpu_custom_call.1} parent=123 // pred_check_branch
          %883 = sbr.rel (%p881) target = $region132
        $region131: #{tpu_custom_call.1} parent=123 // pred_region
          %884 = dma.done [#allocation6], 512
        $region132: #{tpu_custom_call.1} parent=123 // pred_fallthru
          _
        // Predicated region
        $region133: #{tpu_custom_call.1} parent=123 // pred_check
          %p885 = pneg %p299
        $region134: #{tpu_custom_call.1} parent=123 // pred_check_branch
          %887 = sbr.rel (%p885) target = $region136
        $region135: #{tpu_custom_call.1} parent=123 // pred_region
          %888 = dma.done [#allocation6], 1024
        $region136: #{tpu_custom_call.1} parent=123 // pred_fallthru
          _
        // Predicated region
        $region137: #{tpu_custom_call.1} parent=123 // pred_check
          %p889 = pneg %p362
        $region138: #{tpu_custom_call.1} parent=123 // pred_check_branch
          %891 = sbr.rel (%p889) target = $region140
        $region139: #{tpu_custom_call.1} parent=123 // pred_region
          %892 = dma.done [#allocation9], 16
        $region140: #{tpu_custom_call.1} parent=123 // pred_fallthru
          _
        // Predicated region
        $region141: #{tpu_custom_call.1} parent=123 // pred_check
          %p893 = pneg %p404
        $region142: #{tpu_custom_call.1} parent=123 // pred_check_branch
          %895 = sbr.rel (%p893) target = $region144
        $region143: #{tpu_custom_call.1} parent=123 // pred_region
          %896 = dma.done [#allocation9], 16
        $region144: #{tpu_custom_call.1} parent=123 // pred_fallthru
          _
        // Predicated region
        $region145: #{tpu_custom_call.1} parent=123 // pred_check
          %p897 = pneg %p425
        $region146: #{tpu_custom_call.1} parent=123 // pred_check_branch
          %899 = sbr.rel (%p897) target = $region148
        $region147: #{tpu_custom_call.1} parent=123 // pred_region
          %900 = dma.done [#allocation12], 16
        $region148: #{tpu_custom_call.1} parent=123 // pred_fallthru
          _
        // Predicated region
        $region149: #{tpu_custom_call.1} parent=123 // pred_check
          %p901 = pneg %p446
        $region150: #{tpu_custom_call.1} parent=123 // pred_check_branch
          %903 = sbr.rel (%p901) target = $region152
        $region151: #{tpu_custom_call.1} parent=123 // pred_region
          %904 = dma.done [#allocation12], 16
        $region152: #{tpu_custom_call.1} parent=123 // pred_fallthru
          _
        // Predicated region
        $region153: #{tpu_custom_call.1} parent=123 // pred_check
          %p905 = pneg %p467
        $region154: #{tpu_custom_call.1} parent=123 // pred_check_branch
          %907 = sbr.rel (%p905) target = $region156
        $region155: #{tpu_custom_call.1} parent=123 // pred_region
          %908 = dma.done [#allocation15], 1024
        $region156: #{tpu_custom_call.1} parent=123 // pred_fallthru
          _
        // Predicated region
        $region157: #{tpu_custom_call.1} parent=123 // pred_check
          %p909 = pneg %p488
        $region158: #{tpu_custom_call.1} parent=123 // pred_check_branch
          %911 = sbr.rel (%p909) target = $region160
        $region159: #{tpu_custom_call.1} parent=123 // pred_region
          %912 = dma.done [#allocation15], 16
        $region160: #{tpu_custom_call.1} parent=123 // pred_fallthru
          _
        // Predicated region
        $region161: #{tpu_custom_call.1} parent=123 // pred_check
          %p913 = pneg %p509
        $region162: #{tpu_custom_call.1} parent=123 // pred_check_branch
          %915 = sbr.rel (%p913) target = $region164
        $region163: #{tpu_custom_call.1} parent=123 // pred_region
          %916 = dma.done [#allocation18], 512
        $region164: #{tpu_custom_call.1} parent=123 // pred_fallthru
          _
        // Predicated region
        $region165: #{tpu_custom_call.1} parent=123 // pred_check
          %p917 = pneg %p530
        $region166: #{tpu_custom_call.1} parent=123 // pred_check_branch
          %919 = sbr.rel (%p917) target = $region168
        $region167: #{tpu_custom_call.1} parent=123 // pred_region
          %920 = dma.done [#allocation18], 16
        $region168: #{tpu_custom_call.1} parent=123 // pred_fallthru
          _
        // Predicated region
        $region169: #{tpu_custom_call.1} parent=123 // pred_check
          %p921 = pneg %p551
        $region170: #{tpu_custom_call.1} parent=123 // pred_check_branch
          %923 = sbr.rel (%p921) target = $region172
        $region171: #{tpu_custom_call.1} parent=123 // pred_region
          %924 = dma.done [#allocation21], 16
        $region172: #{tpu_custom_call.1} parent=123 // pred_fallthru
          _
        // Predicated region
        $region173: #{tpu_custom_call.1} parent=123 // pred_check
          %p925 = pneg %p572
        $region174: #{tpu_custom_call.1} parent=123 // pred_check_branch
          %927 = sbr.rel (%p925) target = $region176
        $region175: #{tpu_custom_call.1} parent=123 // pred_region
          %928 = dma.done [#allocation21], 16
        $region176: #{tpu_custom_call.1} parent=123 // pred_fallthru
          _
        %p929 = scmp.lt.s32.totalorder %s53, 1
        %s930 = scalar_select %p929, %s53, 1
        %p931 = scmp.lt.s32.totalorder %s54, 0
        %s932 = scalar_select %p931, %s54, 0
        %s933 = sadd.s32 %s932, %s930
        %s934 = smul.addr %s933, 8
        %s935 = scalar_lea.vmem %s0, %s934
        %p936 = pneg %p84
        %p937 = pneg %p81
        %s938 = sand.u32 %s97, 1
        %s939 = scalar_lea.sflag [#allocation3], %s938
        %s940 = sand.u32 %s97, 1
        %s941 = smul.addr %s940, 8
        %s942 = scalar_lea.vmem [#allocation2], %s941
        %p943 = pneg %p110
        %p944 = pneg %p107
        %p945 = pneg %p131
        %p946 = pneg %p128
        %p947 = pneg %p152
        %p948 = pneg %p149
        %p949 = pneg %p173
        %p950 = pneg %p170
        %p951 = pneg %p194
        %p952 = pneg %p191
        %p953 = pneg %p215
        %p954 = pneg %p212
        %p955 = pneg %p236
        %p956 = pneg %p233
        %p957 = pneg %p257
        %p958 = pneg %p254
        %p959 = pneg %p278
        %p960 = pneg %p275
        %p961 = pneg %p299
        %p962 = pneg %p296
        %p963 = pneg %p320
        %p964 = pneg %p317
        %p965 = pneg %p341
        %p966 = pneg %p338
        %p967 = pneg %p362
        %p968 = pneg %p359
        %p969 = pneg %p383
        %p970 = pneg %p380
        %p971 = pneg %p404
        %p972 = pneg %p401
        %p973 = pneg %p425
        %p974 = pneg %p422
        %p975 = pneg %p446
        %p976 = pneg %p443
        %p977 = pneg %p467
        %p978 = pneg %p464
        %p979 = pneg %p488
        %p980 = pneg %p485
        %p981 = pneg %p509
        %p982 = pneg %p506
        %p983 = pneg %p530
        %p984 = pneg %p527
        %p985 = pneg %p551
        %p986 = pneg %p548
        %p987 = pneg %p572
        %p988 = pneg %p569
        %p989 = pneg %p593
        %p990 = pneg %p590
        %p991 = pneg %p614
        %p992 = pneg %p611
        %p993 = pneg %p642
        %p994 = pneg %p639
        %s995 = sand.u32 %s629, 1
        %s996 = scalar_lea.sflag [#allocation4], %s995
        %s997 = sand.u32 %s629, 1
        %s998 = smul.addr %s997, 128
        %s999 = scalar_lea.vmem [#allocation23], %s998
        %p1000 = scmp.lt.s32.totalorder %s53, 1
        %s1001 = scalar_select %p1000, %s53, 1
        %p1002 = scmp.lt.s32.totalorder %s54, 0
        %s1003 = scalar_select %p1002, %s54, 0
        %s1004 = sadd.s32 %s1003, %s1001
        %s1005 = smul.addr %s1004, 8
        %s1006 = scalar_lea.vmem %s0, %s1005
        %s1007 = smul.u32 8, %s54
        %v1009 = vld [vmem:[%s1006] sm:$0xff]
        %v1010 = vld [vmem:[%s876] sm:$0xff]
        %v1011 = vld [vmem:[%s2] sm:$0xf]
        %v1012 = vld [vmem:[%s2 + $0x4] sm:$0xf]
        %v1013 = vld [vmem:[%s2 + $0x8] sm:$0xf]
        %v1014 = vld [vmem:[%s2 + $0xc] sm:$0xf]
        %v1015 = vld [vmem:[%s2 + $0x10] sm:$0xf]
        %v1016 = vld [vmem:[%s2 + $0x14] sm:$0xf]
        %v1017 = vld [vmem:[%s2 + $0x18] sm:$0xf]
        %v1018 = vld [vmem:[%s2 + $0x1c] sm:$0xf]
        %v1019 = vpack.c.bf16 %v1009, %v1009
        %v1020 = vld [vmem:[%s3] sm:$0x1]
        %v1022 = vlaneseq
        %v1023 = vshrl.u32 %v1022, 7
        %v1024 = vsub.s32 0, %v1023
        %v1025 = vrot.slane %v1020, %v1024
        %v1035 = vunpack.c.l.b16 %v1011
        %v1036 = vunpack.c.l.b16 %v1012
        %v1037 = vunpack.c.l.b16 %v1013
        %v1038 = vunpack.c.l.b16 %v1014
        %v1039 = vunpack.c.l.b16 %v1015
        %v1040 = vunpack.c.l.b16 %v1016
        %v1041 = vunpack.c.l.b16 %v1017
        %v1042 = vunpack.c.l.b16 %v1018
        %v1043 = vpack.c.b16 %v1036, %v1035
        %v1044 = vpack.c.b16 %v1038, %v1037
        %v1045 = vpack.c.b16 %v1040, %v1039
        %v1046 = vpack.c.b16 %v1042, %v1041
        %vm1051 = vcmask 523264
        %v1053 = vsel %vm1051, %v1019, 0
        %1055 = vmatprep.subr.bf16.mxu0 0
        %1056 = vmatpush1.bf16.msra.mxu0 %v1043
        %1057 = vmatprep.subr.bf16.mxu0 0
        %1058 = vmatpush1.bf16.msra.mxu0 %v1044
        %1059 = vmatprep.subr.bf16.mxu0 0
        %1060 = vmatpush1.bf16.msra.mxu0 %v1045
        %1061 = vmatprep.subr.bf16.mxu0 0
        %1062 = vmatpush1.bf16.msra.mxu0 %v1046
        %1063 = vmatprep.subr.bf16.mxu0 0
        %1064 = vmatpush1.bf16.msra.mxu0 0
        %1065 = vmatprep.subr.bf16.mxu0 0
        %1066 = vmatpush1.bf16.msra.mxu0 0
        %1067 = vmatprep.subr.bf16.mxu0 0
        %1068 = vmatpush1.bf16.msra.mxu0 0
        %1069 = vmatprep.subr.bf16.mxu0 0
        %1070 = vmatpush1.bf16.msra.mxu0 0
        %1071 = vmatprep.subr.bf16.mxu0 0
        %1072 = vmatpush1.bf16.msra.mxu0 0
        %1073 = vmatprep.subr.bf16.mxu0 0
        %1074 = vmatpush1.bf16.msra.mxu0 0
        %1075 = vmatprep.subr.bf16.mxu0 0
        %1076 = vmatpush1.bf16.msra.mxu0 0
        %1077 = vmatprep.subr.bf16.mxu0 0
        %1078 = vmatpush1.bf16.msra.mxu0 0
        %1079 = vmatprep.subr.bf16.mxu0 0
        %1080 = vmatpush1.bf16.msra.mxu0 0
        %1081 = vmatprep.subr.bf16.mxu0 0
        %1082 = vmatpush1.bf16.msra.mxu0 0
        %1083 = vmatprep.subr.bf16.mxu0 0
        %1084 = vmatpush1.bf16.msra.mxu0 0
        %1085 = vmatprep.subr.bf16.mxu0 0
        %1086 = vmatpush1.bf16.msra.mxu0 0
        %1087 = vmatprep.mubr.bf16.mxu0 0
        %1088 = vmatmul.mubr.bf16.gmra.mrb[0].mxu0 %v1053
        %v1089 = vpop.f32.mrb[0].mxu0
        %v1090 = vadd.f32 %v1025, %v1089
        %v1091 = vpop.f32.mrb[0].mxu0
        %v1092 = vpop.f32.mrb[0].mxu0
        %v1093 = vpop.f32.mrb[0].mxu0
        %1094 = vdwg.mxu0
        %v1095 = vld [vmem:[%s4] sm:$0x1]
        %v1096 = vld [vmem:[%s5] sm:$0x1]
        %1097 = vadd.xlane.f32.xlu0 %v1090
        %v1098 = vpop.xlane.xlu0 %1097
        %v1099 = vrcp.pop 128.0
        %v1100 = vmul.f32 %v1098, %v1099
        %v1101 = vsub.f32 %v1090, %v1100
        %v1102 = vmul.f32 %v1101, %v1101
        %1103 = vadd.xlane.f32.xlu0 %v1102
        %v1104 = vpop.xlane.xlu0 %1103
        %v1105 = vmul.f32 %v1104, %v1099
        %v1106 = vadd.f32 %v1105, 1e-05
        %v1107 = vrsqrt.pop %v1106
        %v1108 = vmul.f32 %v1101, %v1107
        %v1110 = vlaneseq
        %v1111 = vshrl.u32 %v1110, 7
        %v1112 = vsub.s32 0, %v1111
        %v1113 = vrot.slane %v1095, %v1112
        %v1115 = vmul.f32 %v1108, %v1113
        %v1117 = vlaneseq
        %v1118 = vshrl.u32 %v1117, 7
        %v1119 = vsub.s32 0, %v1118
        %v1120 = vrot.slane %v1096, %v1119
        %v1122 = vadd.f32 %v1115, %v1120
        %v1123 = vmax.f32 %v1122, 0.0
        %v1124 = vld [vmem:[#allocation5] sm:$0xf]
        %v1125 = vld [vmem:[#allocation5 + $0x4] sm:$0xf]
        %v1126 = vld [vmem:[#allocation5 + $0x8] sm:$0xf]
        %v1127 = vld [vmem:[#allocation5 + $0xc] sm:$0xf]
        %v1128 = vld [vmem:[#allocation5 + $0x10] sm:$0xf]
        %v1129 = vld [vmem:[#allocation5 + $0x14] sm:$0xf]
        %v1130 = vld [vmem:[#allocation5 + $0x18] sm:$0xf]
        %v1131 = vld [vmem:[#allocation5 + $0x1c] sm:$0xf]
        %v1132 = vpack.c.bf16 %v1010, %v1010
        %v1133 = vld [vmem:[%s7] sm:$0x1]
        %v1135 = vlaneseq
        %v1136 = vshrl.u32 %v1135, 7
        %v1137 = vsub.s32 0, %v1136
        %v1138 = vrot.slane %v1133, %v1137
        %v1148 = vunpack.c.l.b16 %v1124
        %v1149 = vunpack.c.l.b16 %v1125
        %v1150 = vunpack.c.l.b16 %v1126
        %v1151 = vunpack.c.l.b16 %v1127
        %v1152 = vunpack.c.l.b16 %v1128
        %v1153 = vunpack.c.l.b16 %v1129
        %v1154 = vunpack.c.l.b16 %v1130
        %v1155 = vunpack.c.l.b16 %v1131
        %v1156 = vpack.c.b16 %v1149, %v1148
        %v1157 = vpack.c.b16 %v1151, %v1150
        %v1158 = vpack.c.b16 %v1153, %v1152
        %v1159 = vpack.c.b16 %v1155, %v1154
        %v1165 = vsel %vm1051, %v1132, 0
        %1167 = vmatprep.subr.bf16.mxu0 0
        %1168 = vmatpush1.bf16.msra.mxu0 %v1156
        %1169 = vmatprep.subr.bf16.mxu0 0
        %1170 = vmatpush1.bf16.msra.mxu0 %v1157
        %1171 = vmatprep.subr.bf16.mxu0 0
        %1172 = vmatpush1.bf16.msra.mxu0 %v1158
        %1173 = vmatprep.subr.bf16.mxu0 0
        %1174 = vmatpush1.bf16.msra.mxu0 %v1159
        %1175 = vmatprep.subr.bf16.mxu0 0
        %1176 = vmatpush1.bf16.msra.mxu0 0
        %1177 = vmatprep.subr.bf16.mxu0 0
        %1178 = vmatpush1.bf16.msra.mxu0 0
        %1179 = vmatprep.subr.bf16.mxu0 0
        %1180 = vmatpush1.bf16.msra.mxu0 0
        %1181 = vmatprep.subr.bf16.mxu0 0
        %1182 = vmatpush1.bf16.msra.mxu0 0
        %1183 = vmatprep.subr.bf16.mxu0 0
        %1184 = vmatpush1.bf16.msra.mxu0 0
        %1185 = vmatprep.subr.bf16.mxu0 0
        %1186 = vmatpush1.bf16.msra.mxu0 0
        %1187 = vmatprep.subr.bf16.mxu0 0
        %1188 = vmatpush1.bf16.msra.mxu0 0
        %1189 = vmatprep.subr.bf16.mxu0 0
        %1190 = vmatpush1.bf16.msra.mxu0 0
        %1191 = vmatprep.subr.bf16.mxu0 0
        %1192 = vmatpush1.bf16.msra.mxu0 0
        %1193 = vmatprep.subr.bf16.mxu0 0
        %1194 = vmatpush1.bf16.msra.mxu0 0
        %1195 = vmatprep.subr.bf16.mxu0 0
        %1196 = vmatpush1.bf16.msra.mxu0 0
        %1197 = vmatprep.subr.bf16.mxu0 0
        %1198 = vmatpush1.bf16.msra.mxu0 0
        %1199 = vmatprep.mubr.bf16.mxu0 0
        %1200 = vmatmul.mubr.bf16.gmra.mrb[0].mxu0 %v1165
        %v1201 = vpop.f32.mrb[0].mxu0
        %v1202 = vadd.f32 %v1138, %v1201
        %v1203 = vpop.f32.mrb[0].mxu0
        %v1204 = vpop.f32.mrb[0].mxu0
        %v1205 = vpop.f32.mrb[0].mxu0
        %1206 = vdwg.mxu0
        %v1207 = vld [vmem:[%s8] sm:$0x1]
        %v1208 = vld [vmem:[%s9] sm:$0x1]
        %1209 = vadd.xlane.f32.xlu0 %v1202
        %v1210 = vpop.xlane.xlu0 %1209
        %v1211 = vmul.f32 %v1210, %v1099
        %v1212 = vsub.f32 %v1202, %v1211
        %v1213 = vmul.f32 %v1212, %v1212
        %1214 = vadd.xlane.f32.xlu0 %v1213
        %v1215 = vpop.xlane.xlu0 %1214
        %v1216 = vmul.f32 %v1215, %v1099
        %v1217 = vadd.f32 %v1216, 1e-05
        %v1218 = vrsqrt.pop %v1217
        %v1219 = vmul.f32 %v1212, %v1218
        %v1221 = vlaneseq
        %v1222 = vshrl.u32 %v1221, 7
        %v1223 = vsub.s32 0, %v1222
        %v1224 = vrot.slane %v1207, %v1223
        %v1226 = vmul.f32 %v1219, %v1224
        %v1228 = vlaneseq
        %v1229 = vshrl.u32 %v1228, 7
        %v1230 = vsub.s32 0, %v1229
        %v1231 = vrot.slane %v1208, %v1230
        %v1233 = vadd.f32 %v1226, %v1231
        %v1234 = vmax.f32 %v1233, 0.0
        %v1235 = vld [vmem:[#allocation7] sm:$0xf]
        %v1236 = vld [vmem:[#allocation7 + $0x4] sm:$0xf]
        %v1237 = vld [vmem:[#allocation7 + $0x8] sm:$0xf]
        %v1238 = vld [vmem:[#allocation7 + $0xc] sm:$0xf]
        %v1239 = vld [vmem:[#allocation7 + $0x10] sm:$0xf]
        %v1240 = vld [vmem:[#allocation7 + $0x14] sm:$0xf]
        %v1241 = vld [vmem:[#allocation7 + $0x18] sm:$0xf]
        %v1242 = vld [vmem:[#allocation7 + $0x1c] sm:$0xf]
        %v1243 = vld [vmem:[#allocation7 + $0x20] sm:$0xf]
        %v1244 = vld [vmem:[#allocation7 + $0x24] sm:$0xf]
        %v1245 = vld [vmem:[#allocation7 + $0x28] sm:$0xf]
        %v1246 = vld [vmem:[#allocation7 + $0x2c] sm:$0xf]
        %v1247 = vld [vmem:[#allocation7 + $0x30] sm:$0xf]
        %v1248 = vld [vmem:[#allocation7 + $0x34] sm:$0xf]
        %v1249 = vld [vmem:[#allocation7 + $0x38] sm:$0xf]
        %v1250 = vld [vmem:[#allocation7 + $0x3c] sm:$0xf]
        %v1251 = vpack.c.bf16 %v1123, %v1123
        %v1268 = vunpack.c.l.b16 %v1235
        %v1269 = vunpack.c.l.b16 %v1236
        %v1270 = vunpack.c.l.b16 %v1237
        %v1271 = vunpack.c.l.b16 %v1238
        %v1272 = vunpack.c.l.b16 %v1239
        %v1273 = vunpack.c.l.b16 %v1240
        %v1274 = vunpack.c.l.b16 %v1241
        %v1275 = vunpack.c.l.b16 %v1242
        %v1276 = vunpack.c.l.b16 %v1243
        %v1277 = vunpack.c.l.b16 %v1244
        %v1278 = vunpack.c.l.b16 %v1245
        %v1279 = vunpack.c.l.b16 %v1246
        %v1280 = vunpack.c.l.b16 %v1247
        %v1281 = vunpack.c.l.b16 %v1248
        %v1282 = vunpack.c.l.b16 %v1249
        %v1283 = vunpack.c.l.b16 %v1250
        %v1284 = vpack.c.b16 %v1269, %v1268
        %v1285 = vpack.c.b16 %v1271, %v1270
        %v1286 = vpack.c.b16 %v1273, %v1272
        %v1287 = vpack.c.b16 %v1275, %v1274
        %v1288 = vpack.c.b16 %v1277, %v1276
        %v1289 = vpack.c.b16 %v1279, %v1278
        %v1290 = vpack.c.b16 %v1281, %v1280
        %v1291 = vpack.c.b16 %v1283, %v1282
        %1300 = vmatprep.subr.bf16.mxu0 0
        %1301 = vmatpush1.bf16.msra.mxu0 %v1284
        %1302 = vmatprep.subr.bf16.mxu0 0
        %1303 = vmatpush1.bf16.msra.mxu0 %v1285
        %1304 = vmatprep.subr.bf16.mxu0 0
        %1305 = vmatpush1.bf16.msra.mxu0 %v1286
        %1306 = vmatprep.subr.bf16.mxu0 0
        %1307 = vmatpush1.bf16.msra.mxu0 %v1287
        %1308 = vmatprep.subr.bf16.mxu0 0
        %1309 = vmatpush1.bf16.msra.mxu0 %v1288
        %1310 = vmatprep.subr.bf16.mxu0 0
        %1311 = vmatpush1.bf16.msra.mxu0 %v1289
        %1312 = vmatprep.subr.bf16.mxu0 0
        %1313 = vmatpush1.bf16.msra.mxu0 %v1290
        %1314 = vmatprep.subr.bf16.mxu0 0
        %1315 = vmatpush1.bf16.msra.mxu0 %v1291
        %1316 = vmatprep.subr.bf16.mxu0 0
        %1317 = vmatpush1.bf16.msra.mxu0 0
        %1318 = vmatprep.subr.bf16.mxu0 0
        %1319 = vmatpush1.bf16.msra.mxu0 0
        %1320 = vmatprep.subr.bf16.mxu0 0
        %1321 = vmatpush1.bf16.msra.mxu0 0
        %1322 = vmatprep.subr.bf16.mxu0 0
        %1323 = vmatpush1.bf16.msra.mxu0 0
        %1324 = vmatprep.subr.bf16.mxu0 0
        %1325 = vmatpush1.bf16.msra.mxu0 0
        %1326 = vmatprep.subr.bf16.mxu0 0
        %1327 = vmatpush1.bf16.msra.mxu0 0
        %1328 = vmatprep.subr.bf16.mxu0 0
        %1329 = vmatpush1.bf16.msra.mxu0 0
        %1330 = vmatprep.subr.bf16.mxu0 0
        %1331 = vmatpush1.bf16.msra.mxu0 0
        %1332 = vmatprep.mubr.bf16.mxu0 0
        %1333 = vmatmul.mubr.bf16.gmra.mrb[0].mxu0 %v1251
        %v1334 = vpop.f32.mrb[0].mxu0
        %v1335 = vadd.f32 0.0, %v1334
        %v1336 = vpop.f32.mrb[0].mxu0
        %v1337 = vpop.f32.mrb[0].mxu0
        %v1338 = vpop.f32.mrb[0].mxu0
        %1339 = vdwg.mxu0
        %v1340 = vpack.c.bf16 %v1234, %v1234
        %1341 = vmatprep.subr.bf16.mxu0 0
        %1342 = vmatpush1.bf16.msra.mxu0 %v1284
        %1343 = vmatprep.subr.bf16.mxu0 0
        %1344 = vmatpush1.bf16.msra.mxu0 %v1285
        %1345 = vmatprep.subr.bf16.mxu0 0
        %1346 = vmatpush1.bf16.msra.mxu0 %v1286
        %1347 = vmatprep.subr.bf16.mxu0 0
        %1348 = vmatpush1.bf16.msra.mxu0 %v1287
        %1349 = vmatprep.subr.bf16.mxu0 0
        %1350 = vmatpush1.bf16.msra.mxu0 %v1288
        %1351 = vmatprep.subr.bf16.mxu0 0
        %1352 = vmatpush1.bf16.msra.mxu0 %v1289
        %1353 = vmatprep.subr.bf16.mxu0 0
        %1354 = vmatpush1.bf16.msra.mxu0 %v1290
        %1355 = vmatprep.subr.bf16.mxu0 0
        %1356 = vmatpush1.bf16.msra.mxu0 %v1291
        %1357 = vmatprep.subr.bf16.mxu0 0
        %1358 = vmatpush1.bf16.msra.mxu0 0
        %1359 = vmatprep.subr.bf16.mxu0 0
        %1360 = vmatpush1.bf16.msra.mxu0 0
        %1361 = vmatprep.subr.bf16.mxu0 0
        %1362 = vmatpush1.bf16.msra.mxu0 0
        %1363 = vmatprep.subr.bf16.mxu0 0
        %1364 = vmatpush1.bf16.msra.mxu0 0
        %1365 = vmatprep.subr.bf16.mxu0 0
        %1366 = vmatpush1.bf16.msra.mxu0 0
        %1367 = vmatprep.subr.bf16.mxu0 0
        %1368 = vmatpush1.bf16.msra.mxu0 0
        %1369 = vmatprep.subr.bf16.mxu0 0
        %1370 = vmatpush1.bf16.msra.mxu0 0
        %1371 = vmatprep.subr.bf16.mxu0 0
        %1372 = vmatpush1.bf16.msra.mxu0 0
        %1373 = vmatprep.mubr.bf16.mxu0 0
        %1374 = vmatmul.mubr.bf16.gmra.mrb[0].mxu0 %v1340
        %v1375 = vpop.f32.mrb[0].mxu0
        %v1376 = vadd.f32 0.0, %v1375
        %v1377 = vpop.f32.mrb[0].mxu0
        %v1378 = vpop.f32.mrb[0].mxu0
        %v1379 = vpop.f32.mrb[0].mxu0
        %1380 = vdwg.mxu0
        %v1382 = vcombine.high %v1335, %v1335
        %v1384 = vunpack.c.l.s4 1966171168
        %v1385 = vunpack.c.0.s8 %v1384
        %v1386 = vlaneseq
        %v1387 = vshrl.u32 %v1386, 7
        %v1388 = vsub.s32 %v1385, %v1387
        %v1389 = vrot.slane %v1335, %v1388
        %v1391 = vunpack.c.l.s4 1966171168
        %v1392 = vunpack.c.0.s8 %v1391
        %v1393 = vlaneseq
        %v1394 = vshrl.u32 %v1393, 7
        %v1395 = vsub.s32 %v1392, %v1394
        %v1396 = vrot.slane %v1382, %v1395
        %v1397 = vcombine.high %v1389, %v1389
        %v1398 = vcombine.high %v1396, %v1396
        %v1400 = vunpack.c.l.s4 1966171168
        %v1401 = vunpack.c.0.s8 %v1400
        %v1402 = vlaneseq
        %v1403 = vshrl.u32 %v1402, 7
        %v1404 = vsub.s32 %v1401, %v1403
        %v1405 = vrot.slane %v1389, %v1404
        %v1407 = vunpack.c.l.s4 1966171168
        %v1408 = vunpack.c.0.s8 %v1407
        %v1409 = vlaneseq
        %v1410 = vshrl.u32 %v1409, 7
        %v1411 = vsub.s32 %v1408, %v1410
        %v1412 = vrot.slane %v1396, %v1411
        %v1414 = vunpack.c.l.s4 1966171168
        %v1415 = vunpack.c.0.s8 %v1414
        %v1416 = vlaneseq
        %v1417 = vshrl.u32 %v1416, 7
        %v1418 = vsub.s32 %v1415, %v1417
        %v1419 = vrot.slane %v1397, %v1418
        %v1421 = vunpack.c.l.s4 1966171168
        %v1422 = vunpack.c.0.s8 %v1421
        %v1423 = vlaneseq
        %v1424 = vshrl.u32 %v1423, 7
        %v1425 = vsub.s32 %v1422, %v1424
        %v1426 = vrot.slane %v1398, %v1425
        %v1427 = vcombine.high %v1405, %v1405
        %v1428 = vcombine.high %v1412, %v1412
        %v1429 = vcombine.high %v1419, %v1419
        %v1430 = vcombine.high %v1426, %v1426
        %v1431 = vlaneseq
        %v1432 = vshrl.u32 %v1431, 7
        %v1433 = vsub.s32 0, %v1432
        %v1434 = vrot.slane %v1405, %v1433
        %v1435 = vlaneseq
        %v1436 = vshrl.u32 %v1435, 7
        %v1437 = vsub.s32 0, %v1436
        %v1438 = vrot.slane %v1419, %v1437
        %v1439 = vlaneseq
        %v1440 = vshrl.u32 %v1439, 7
        %v1441 = vsub.s32 0, %v1440
        %v1442 = vrot.slane %v1427, %v1441
        %v1443 = vlaneseq
        %v1444 = vshrl.u32 %v1443, 7
        %v1445 = vsub.s32 0, %v1444
        %v1446 = vrot.slane %v1429, %v1445
        %v1447 = vlaneseq
        %v1448 = vshrl.u32 %v1447, 7
        %v1449 = vsub.s32 0, %v1448
        %v1450 = vrot.slane %v1412, %v1449
        %v1451 = vlaneseq
        %v1452 = vshrl.u32 %v1451, 7
        %v1453 = vsub.s32 0, %v1452
        %v1454 = vrot.slane %v1426, %v1453
        %v1455 = vlaneseq
        %v1456 = vshrl.u32 %v1455, 7
        %v1457 = vsub.s32 0, %v1456
        %v1458 = vrot.slane %v1428, %v1457
        %v1459 = vlaneseq
        %v1460 = vshrl.u32 %v1459, 7
        %v1461 = vsub.s32 0, %v1460
        %v1462 = vrot.slane %v1430, %v1461
        %v1471 = vadd.f32 %v1434, %v1376
        %v1472 = vadd.f32 %v1438, %v1376
        %v1473 = vadd.f32 %v1442, %v1376
        %v1474 = vadd.f32 %v1446, %v1376
        %v1475 = vadd.f32 %v1450, %v1376
        %v1476 = vadd.f32 %v1454, %v1376
        %v1477 = vadd.f32 %v1458, %v1376
        %v1478 = vadd.f32 %v1462, %v1376
        %v1479 = vld [vmem:[%s11] sm:$0x1]
        %v1481 = vlaneseq
        %v1482 = vshrl.u32 %v1481, 7
        %v1483 = vsub.s32 0, %v1482
        %v1484 = vrot.slane %v1479, %v1483
        %v1486 = vadd.f32 %v1471, %v1484
        %v1487 = vadd.f32 %v1472, %v1484
        %v1488 = vadd.f32 %v1473, %v1484
        %v1489 = vadd.f32 %v1474, %v1484
        %v1490 = vadd.f32 %v1475, %v1484
        %v1491 = vadd.f32 %v1476, %v1484
        %v1492 = vadd.f32 %v1477, %v1484
        %v1493 = vadd.f32 %v1478, %v1484
        %v1494 = vld [vmem:[%s12] sm:$0x1]
        %v1495 = vld [vmem:[#allocation8] sm:$0x1]
        %1496 = vadd.xlane.f32.xlu0 %v1486
        %v1497 = vpop.xlane.xlu0 %1496
        %1498 = vadd.xlane.f32.xlu0 %v1487
        %v1499 = vpop.xlane.xlu0 %1498
        %1500 = vadd.xlane.f32.xlu0 %v1488
        %v1501 = vpop.xlane.xlu0 %1500
        %1502 = vadd.xlane.f32.xlu0 %v1489
        %v1503 = vpop.xlane.xlu0 %1502
        %1504 = vadd.xlane.f32.xlu0 %v1490
        %v1505 = vpop.xlane.xlu0 %1504
        %1506 = vadd.xlane.f32.xlu0 %v1491
        %v1507 = vpop.xlane.xlu0 %1506
        %1508 = vadd.xlane.f32.xlu0 %v1492
        %v1509 = vpop.xlane.xlu0 %1508
        %1510 = vadd.xlane.f32.xlu0 %v1493
        %v1511 = vpop.xlane.xlu0 %1510
        %v1512 = vmul.f32 %v1497, %v1099
        %v1513 = vmul.f32 %v1499, %v1099
        %v1514 = vmul.f32 %v1501, %v1099
        %v1515 = vmul.f32 %v1503, %v1099
        %v1516 = vmul.f32 %v1505, %v1099
        %v1517 = vmul.f32 %v1507, %v1099
        %v1518 = vmul.f32 %v1509, %v1099
        %v1519 = vmul.f32 %v1511, %v1099
        %v1520 = vsub.f32 %v1486, %v1512
        %v1521 = vsub.f32 %v1487, %v1513
        %v1522 = vsub.f32 %v1488, %v1514
        %v1523 = vsub.f32 %v1489, %v1515
        %v1524 = vsub.f32 %v1490, %v1516
        %v1525 = vsub.f32 %v1491, %v1517
        %v1526 = vsub.f32 %v1492, %v1518
        %v1527 = vsub.f32 %v1493, %v1519
        %v1528 = vmul.f32 %v1520, %v1520
        %v1529 = vmul.f32 %v1521, %v1521
        %v1530 = vmul.f32 %v1522, %v1522
        %v1531 = vmul.f32 %v1523, %v1523
        %v1532 = vmul.f32 %v1524, %v1524
        %v1533 = vmul.f32 %v1525, %v1525
        %v1534 = vmul.f32 %v1526, %v1526
        %v1535 = vmul.f32 %v1527, %v1527
        %1536 = vadd.xlane.f32.xlu0 %v1528
        %v1537 = vpop.xlane.xlu0 %1536
        %1538 = vadd.xlane.f32.xlu0 %v1529
        %v1539 = vpop.xlane.xlu0 %1538
        %1540 = vadd.xlane.f32.xlu0 %v1530
        %v1541 = vpop.xlane.xlu0 %1540
        %1542 = vadd.xlane.f32.xlu0 %v1531
        %v1543 = vpop.xlane.xlu0 %1542
        %1544 = vadd.xlane.f32.xlu0 %v1532
        %v1545 = vpop.xlane.xlu0 %1544
        %1546 = vadd.xlane.f32.xlu0 %v1533
        %v1547 = vpop.xlane.xlu0 %1546
        %1548 = vadd.xlane.f32.xlu0 %v1534
        %v1549 = vpop.xlane.xlu0 %1548
        %1550 = vadd.xlane.f32.xlu0 %v1535
        %v1551 = vpop.xlane.xlu0 %1550
        %v1552 = vmul.f32 %v1537, %v1099
        %v1553 = vmul.f32 %v1539, %v1099
        %v1554 = vmul.f32 %v1541, %v1099
        %v1555 = vmul.f32 %v1543, %v1099
        %v1556 = vmul.f32 %v1545, %v1099
        %v1557 = vmul.f32 %v1547, %v1099
        %v1558 = vmul.f32 %v1549, %v1099
        %v1559 = vmul.f32 %v1551, %v1099
        %v1560 = vadd.f32 %v1552, 1e-05
        %v1561 = vadd.f32 %v1553, 1e-05
        %v1562 = vadd.f32 %v1554, 1e-05
        %v1563 = vadd.f32 %v1555, 1e-05
        %v1564 = vadd.f32 %v1556, 1e-05
        %v1565 = vadd.f32 %v1557, 1e-05
        %v1566 = vadd.f32 %v1558, 1e-05
        %v1567 = vadd.f32 %v1559, 1e-05
        %v1568 = vrsqrt.pop %v1560
        %v1569 = vrsqrt.pop %v1561
        %v1570 = vrsqrt.pop %v1562
        %v1571 = vrsqrt.pop %v1563
        %v1572 = vrsqrt.pop %v1564
        %v1573 = vrsqrt.pop %v1565
        %v1574 = vrsqrt.pop %v1566
        %v1575 = vrsqrt.pop %v1567
        %v1576 = vmul.f32 %v1520, %v1568
        %v1577 = vmul.f32 %v1521, %v1569
        %v1578 = vmul.f32 %v1522, %v1570
        %v1579 = vmul.f32 %v1523, %v1571
        %v1580 = vmul.f32 %v1524, %v1572
        %v1581 = vmul.f32 %v1525, %v1573
        %v1582 = vmul.f32 %v1526, %v1574
        %v1583 = vmul.f32 %v1527, %v1575
        %v1585 = vlaneseq
        %v1586 = vshrl.u32 %v1585, 7
        %v1587 = vsub.s32 0, %v1586
        %v1588 = vrot.slane %v1494, %v1587
        %v1590 = vmul.f32 %v1576, %v1588
        %v1591 = vmul.f32 %v1577, %v1588
        %v1592 = vmul.f32 %v1578, %v1588
        %v1593 = vmul.f32 %v1579, %v1588
        %v1594 = vmul.f32 %v1580, %v1588
        %v1595 = vmul.f32 %v1581, %v1588
        %v1596 = vmul.f32 %v1582, %v1588
        %v1597 = vmul.f32 %v1583, %v1588
        %v1599 = vlaneseq
        %v1600 = vshrl.u32 %v1599, 7
        %v1601 = vsub.s32 0, %v1600
        %v1602 = vrot.slane %v1495, %v1601
        %v1604 = vadd.f32 %v1590, %v1602
        %v1605 = vadd.f32 %v1591, %v1602
        %v1606 = vadd.f32 %v1592, %v1602
        %v1607 = vadd.f32 %v1593, %v1602
        %v1608 = vadd.f32 %v1594, %v1602
        %v1609 = vadd.f32 %v1595, %v1602
        %v1610 = vadd.f32 %v1596, %v1602
        %v1611 = vadd.f32 %v1597, %v1602
        %v1612 = vmax.f32 %v1604, 0.0
        %v1613 = vmax.f32 %v1605, 0.0
        %v1614 = vmax.f32 %v1606, 0.0
        %v1615 = vmax.f32 %v1607, 0.0
        %v1616 = vmax.f32 %v1608, 0.0
        %v1617 = vmax.f32 %v1609, 0.0
        %v1618 = vmax.f32 %v1610, 0.0
        %v1619 = vmax.f32 %v1611, 0.0
        %v1620 = vld [vmem:[%s14] sm:$0xf]
        %v1621 = vld [vmem:[%s14 + $0x4] sm:$0xf]
        %v1622 = vld [vmem:[%s14 + $0x8] sm:$0xf]
        %v1623 = vld [vmem:[%s14 + $0xc] sm:$0xf]
        %v1624 = vld [vmem:[%s14 + $0x10] sm:$0xf]
        %v1625 = vld [vmem:[%s14 + $0x14] sm:$0xf]
        %v1626 = vld [vmem:[%s14 + $0x18] sm:$0xf]
        %v1627 = vld [vmem:[%s14 + $0x1c] sm:$0xf]
        %v1628 = vld [vmem:[%s14 + $0x20] sm:$0xf]
        %v1629 = vld [vmem:[%s14 + $0x24] sm:$0xf]
        %v1630 = vld [vmem:[%s14 + $0x28] sm:$0xf]
        %v1631 = vld [vmem:[%s14 + $0x2c] sm:$0xf]
        %v1632 = vld [vmem:[%s14 + $0x30] sm:$0xf]
        %v1633 = vld [vmem:[%s14 + $0x34] sm:$0xf]
        %v1634 = vld [vmem:[%s14 + $0x38] sm:$0xf]
        %v1635 = vld [vmem:[%s14 + $0x3c] sm:$0xf]
        %v1636 = vpack.c.bf16 %v1613, %v1612
        %v1637 = vpack.c.bf16 %v1615, %v1614
        %v1638 = vpack.c.bf16 %v1617, %v1616
        %v1639 = vpack.c.bf16 %v1619, %v1618
        %v1640 = vld [vmem:[#allocation10] sm:$0x1]
        %v1642 = vlaneseq
        %v1643 = vshrl.u32 %v1642, 7
        %v1644 = vsub.s32 0, %v1643
        %v1645 = vrot.slane %v1640, %v1644
        %v1663 = vunpack.c.l.b16 %v1620
        %v1664 = vunpack.c.l.b16 %v1621
        %v1665 = vunpack.c.l.b16 %v1622
        %v1666 = vunpack.c.l.b16 %v1623
        %v1667 = vunpack.c.l.b16 %v1624
        %v1668 = vunpack.c.l.b16 %v1625
        %v1669 = vunpack.c.l.b16 %v1626
        %v1670 = vunpack.c.l.b16 %v1627
        %v1671 = vunpack.c.l.b16 %v1628
        %v1672 = vunpack.c.l.b16 %v1629
        %v1673 = vunpack.c.l.b16 %v1630
        %v1674 = vunpack.c.l.b16 %v1631
        %v1675 = vunpack.c.l.b16 %v1632
        %v1676 = vunpack.c.l.b16 %v1633
        %v1677 = vunpack.c.l.b16 %v1634
        %v1678 = vunpack.c.l.b16 %v1635
        %v1679 = vpack.c.b16 %v1664, %v1663
        %v1680 = vpack.c.b16 %v1666, %v1665
        %v1681 = vpack.c.b16 %v1668, %v1667
        %v1682 = vpack.c.b16 %v1670, %v1669
        %v1683 = vpack.c.b16 %v1672, %v1671
        %v1684 = vpack.c.b16 %v1674, %v1673
        %v1685 = vpack.c.b16 %v1676, %v1675
        %v1686 = vpack.c.b16 %v1678, %v1677
        %1695 = vmatprep.subr.bf16.mxu0 0
        %1696 = vmatpush1.bf16.msra.mxu0 %v1679
        %1697 = vmatprep.subr.bf16.mxu0 0
        %1698 = vmatpush1.bf16.msra.mxu0 %v1680
        %1699 = vmatprep.subr.bf16.mxu0 0
        %1700 = vmatpush1.bf16.msra.mxu0 %v1681
        %1701 = vmatprep.subr.bf16.mxu0 0
        %1702 = vmatpush1.bf16.msra.mxu0 %v1682
        %1703 = vmatprep.subr.bf16.mxu0 0
        %1704 = vmatpush1.bf16.msra.mxu0 %v1683
        %1705 = vmatprep.subr.bf16.mxu0 0
        %1706 = vmatpush1.bf16.msra.mxu0 %v1684
        %1707 = vmatprep.subr.bf16.mxu0 0
        %1708 = vmatpush1.bf16.msra.mxu0 %v1685
        %1709 = vmatprep.subr.bf16.mxu0 0
        %1710 = vmatpush1.bf16.msra.mxu0 %v1686
        %1711 = vmatprep.subr.bf16.mxu0 0
        %1712 = vmatpush1.bf16.msra.mxu0 0
        %1713 = vmatprep.subr.bf16.mxu0 0
        %1714 = vmatpush1.bf16.msra.mxu0 0
        %1715 = vmatprep.subr.bf16.mxu0 0
        %1716 = vmatpush1.bf16.msra.mxu0 0
        %1717 = vmatprep.subr.bf16.mxu0 0
        %1718 = vmatpush1.bf16.msra.mxu0 0
        %1719 = vmatprep.subr.bf16.mxu0 0
        %1720 = vmatpush1.bf16.msra.mxu0 0
        %1721 = vmatprep.subr.bf16.mxu0 0
        %1722 = vmatpush1.bf16.msra.mxu0 0
        %1723 = vmatprep.subr.bf16.mxu0 0
        %1724 = vmatpush1.bf16.msra.mxu0 0
        %1725 = vmatprep.subr.bf16.mxu0 0
        %1726 = vmatpush1.bf16.msra.mxu0 0
        %1727 = vmatprep.mubr.bf16.mxu0 0
        %1728 = vmatmul.mubr.bf16.gmra.mrb[0].mxu0 %v1636
        %v1729 = vpop.f32.mrb[0].mxu0
        %v1730 = vadd.f32 %v1645, %v1729
        %v1731 = vpop.f32.mrb[0].mxu0
        %v1732 = vpop.f32.mrb[0].mxu0
        %v1733 = vadd.f32 %v1645, %v1732
        %v1734 = vpop.f32.mrb[0].mxu0
        %1735 = vmatprep.mubr.bf16.mxu0 0
        %1736 = vmatmul.mubr.bf16.gmra.mrb[0].mxu0 %v1637
        %v1737 = vpop.f32.mrb[0].mxu0
        %v1738 = vadd.f32 %v1645, %v1737
        %v1739 = vpop.f32.mrb[0].mxu0
        %v1740 = vpop.f32.mrb[0].mxu0
        %v1741 = vadd.f32 %v1645, %v1740
        %v1742 = vpop.f32.mrb[0].mxu0
        %1743 = vmatprep.mubr.bf16.mxu0 0
        %1744 = vmatmul.mubr.bf16.gmra.mrb[0].mxu0 %v1638
        %v1745 = vpop.f32.mrb[0].mxu0
        %v1746 = vadd.f32 %v1645, %v1745
        %v1747 = vpop.f32.mrb[0].mxu0
        %v1748 = vpop.f32.mrb[0].mxu0
        %v1749 = vadd.f32 %v1645, %v1748
        %v1750 = vpop.f32.mrb[0].mxu0
        %1751 = vmatprep.mubr.bf16.mxu0 0
        %1752 = vmatmul.mubr.bf16.gmra.mrb[0].mxu0 %v1639
        %v1753 = vpop.f32.mrb[0].mxu0
        %v1754 = vadd.f32 %v1645, %v1753
        %v1755 = vpop.f32.mrb[0].mxu0
        %v1756 = vpop.f32.mrb[0].mxu0
        %v1757 = vadd.f32 %v1645, %v1756
        %v1758 = vpop.f32.mrb[0].mxu0
        %1759 = vdwg.mxu0
        %v1760 = vld [vmem:[#allocation11] sm:$0x1]
        %v1761 = vld [vmem:[#allocation13] sm:$0x1]
        %v1762 = vsel %vm1051, %v1730, 0.0
        %1763 = vadd.xlane.f32.xlu0 %v1762
        %v1764 = vpop.xlane.xlu0 %1763
        %v1765 = vsel %vm1051, %v1733, 0.0
        %1766 = vadd.xlane.f32.xlu0 %v1765
        %v1767 = vpop.xlane.xlu0 %1766
        %v1768 = vsel %vm1051, %v1738, 0.0
        %1769 = vadd.xlane.f32.xlu0 %v1768
        %v1770 = vpop.xlane.xlu0 %1769
        %v1771 = vsel %vm1051, %v1741, 0.0
        %1772 = vadd.xlane.f32.xlu0 %v1771
        %v1773 = vpop.xlane.xlu0 %1772
        %v1774 = vsel %vm1051, %v1746, 0.0
        %1775 = vadd.xlane.f32.xlu0 %v1774
        %v1776 = vpop.xlane.xlu0 %1775
        %v1777 = vsel %vm1051, %v1749, 0.0
        %1778 = vadd.xlane.f32.xlu0 %v1777
        %v1779 = vpop.xlane.xlu0 %1778
        %v1780 = vsel %vm1051, %v1754, 0.0
        %1781 = vadd.xlane.f32.xlu0 %v1780
        %v1782 = vpop.xlane.xlu0 %1781
        %v1783 = vsel %vm1051, %v1757, 0.0
        %1784 = vadd.xlane.f32.xlu0 %v1783
        %v1785 = vpop.xlane.xlu0 %1784
        %v1786 = vrcp.pop 64.0
        %v1787 = vmul.f32 %v1764, %v1786
        %v1788 = vmul.f32 %v1767, %v1786
        %v1789 = vmul.f32 %v1770, %v1786
        %v1790 = vmul.f32 %v1773, %v1786
        %v1791 = vmul.f32 %v1776, %v1786
        %v1792 = vmul.f32 %v1779, %v1786
        %v1793 = vmul.f32 %v1782, %v1786
        %v1794 = vmul.f32 %v1785, %v1786
        %v1795 = vsub.f32 %v1730, %v1787
        %v1796 = vsub.f32 %v1733, %v1788
        %v1797 = vsub.f32 %v1738, %v1789
        %v1798 = vsub.f32 %v1741, %v1790
        %v1799 = vsub.f32 %v1746, %v1791
        %v1800 = vsub.f32 %v1749, %v1792
        %v1801 = vsub.f32 %v1754, %v1793
        %v1802 = vsub.f32 %v1757, %v1794
        %v1803 = vmul.f32 %v1795, %v1795
        %v1804 = vmul.f32 %v1796, %v1796
        %v1805 = vmul.f32 %v1797, %v1797
        %v1806 = vmul.f32 %v1798, %v1798
        %v1807 = vmul.f32 %v1799, %v1799
        %v1808 = vmul.f32 %v1800, %v1800
        %v1809 = vmul.f32 %v1801, %v1801
        %v1810 = vmul.f32 %v1802, %v1802
        %v1811 = vsel %vm1051, %v1803, 0.0
        %1812 = vadd.xlane.f32.xlu0 %v1811
        %v1813 = vpop.xlane.xlu0 %1812
        %v1814 = vsel %vm1051, %v1804, 0.0
        %1815 = vadd.xlane.f32.xlu0 %v1814
        %v1816 = vpop.xlane.xlu0 %1815
        %v1817 = vsel %vm1051, %v1805, 0.0
        %1818 = vadd.xlane.f32.xlu0 %v1817
        %v1819 = vpop.xlane.xlu0 %1818
        %v1820 = vsel %vm1051, %v1806, 0.0
        %1821 = vadd.xlane.f32.xlu0 %v1820
        %v1822 = vpop.xlane.xlu0 %1821
        %v1823 = vsel %vm1051, %v1807, 0.0
        %1824 = vadd.xlane.f32.xlu0 %v1823
        %v1825 = vpop.xlane.xlu0 %1824
        %v1826 = vsel %vm1051, %v1808, 0.0
        %1827 = vadd.xlane.f32.xlu0 %v1826
        %v1828 = vpop.xlane.xlu0 %1827
        %v1829 = vsel %vm1051, %v1809, 0.0
        %1830 = vadd.xlane.f32.xlu0 %v1829
        %v1831 = vpop.xlane.xlu0 %1830
        %v1832 = vsel %vm1051, %v1810, 0.0
        %1833 = vadd.xlane.f32.xlu0 %v1832
        %v1834 = vpop.xlane.xlu0 %1833
        %v1835 = vmul.f32 %v1813, %v1786
        %v1836 = vmul.f32 %v1816, %v1786
        %v1837 = vmul.f32 %v1819, %v1786
        %v1838 = vmul.f32 %v1822, %v1786
        %v1839 = vmul.f32 %v1825, %v1786
        %v1840 = vmul.f32 %v1828, %v1786
        %v1841 = vmul.f32 %v1831, %v1786
        %v1842 = vmul.f32 %v1834, %v1786
        %v1843 = vadd.f32 %v1835, 1e-05
        %v1844 = vadd.f32 %v1836, 1e-05
        %v1845 = vadd.f32 %v1837, 1e-05
        %v1846 = vadd.f32 %v1838, 1e-05
        %v1847 = vadd.f32 %v1839, 1e-05
        %v1848 = vadd.f32 %v1840, 1e-05
        %v1849 = vadd.f32 %v1841, 1e-05
        %v1850 = vadd.f32 %v1842, 1e-05
        %v1851 = vrsqrt.pop %v1843
        %v1852 = vrsqrt.pop %v1844
        %v1853 = vrsqrt.pop %v1845
        %v1854 = vrsqrt.pop %v1846
        %v1855 = vrsqrt.pop %v1847
        %v1856 = vrsqrt.pop %v1848
        %v1857 = vrsqrt.pop %v1849
        %v1858 = vrsqrt.pop %v1850
        %v1859 = vmul.f32 %v1795, %v1851
        %v1860 = vmul.f32 %v1796, %v1852
        %v1861 = vmul.f32 %v1797, %v1853
        %v1862 = vmul.f32 %v1798, %v1854
        %v1863 = vmul.f32 %v1799, %v1855
        %v1864 = vmul.f32 %v1800, %v1856
        %v1865 = vmul.f32 %v1801, %v1857
        %v1866 = vmul.f32 %v1802, %v1858
        %v1868 = vlaneseq
        %v1869 = vshrl.u32 %v1868, 7
        %v1870 = vsub.s32 0, %v1869
        %v1871 = vrot.slane %v1760, %v1870
        %v1873 = vmul.f32 %v1859, %v1871
        %v1874 = vmul.f32 %v1860, %v1871
        %v1875 = vmul.f32 %v1861, %v1871
        %v1876 = vmul.f32 %v1862, %v1871
        %v1877 = vmul.f32 %v1863, %v1871
        %v1878 = vmul.f32 %v1864, %v1871
        %v1879 = vmul.f32 %v1865, %v1871
        %v1880 = vmul.f32 %v1866, %v1871
        %v1882 = vlaneseq
        %v1883 = vshrl.u32 %v1882, 7
        %v1884 = vsub.s32 0, %v1883
        %v1885 = vrot.slane %v1761, %v1884
        %v1887 = vadd.f32 %v1873, %v1885
        %v1888 = vadd.f32 %v1874, %v1885
        %v1889 = vadd.f32 %v1875, %v1885
        %v1890 = vadd.f32 %v1876, %v1885
        %v1891 = vadd.f32 %v1877, %v1885
        %v1892 = vadd.f32 %v1878, %v1885
        %v1893 = vadd.f32 %v1879, %v1885
        %v1894 = vadd.f32 %v1880, %v1885
        %v1895 = vmax.f32 %v1887, 0.0
        %v1896 = vmax.f32 %v1888, 0.0
        %v1897 = vmax.f32 %v1889, 0.0
        %v1898 = vmax.f32 %v1890, 0.0
        %v1899 = vmax.f32 %v1891, 0.0
        %v1900 = vmax.f32 %v1892, 0.0
        %v1901 = vmax.f32 %v1893, 0.0
        %v1902 = vmax.f32 %v1894, 0.0
        %v1903 = vld [vmem:[#allocation14] sm:$0xf]
        %v1904 = vld [vmem:[#allocation14 + $0x4] sm:$0xf]
        %v1905 = vld [vmem:[#allocation14 + $0x8] sm:$0xf]
        %v1906 = vld [vmem:[#allocation14 + $0xc] sm:$0xf]
        %v1907 = vld [vmem:[#allocation14 + $0x10] sm:$0xf]
        %v1908 = vld [vmem:[#allocation14 + $0x14] sm:$0xf]
        %v1909 = vld [vmem:[#allocation14 + $0x18] sm:$0xf]
        %v1910 = vld [vmem:[#allocation14 + $0x1c] sm:$0xf]
        %v1911 = vld [vmem:[#allocation14 + $0x20] sm:$0xf]
        %v1912 = vld [vmem:[#allocation14 + $0x24] sm:$0xf]
        %v1913 = vld [vmem:[#allocation14 + $0x28] sm:$0xf]
        %v1914 = vld [vmem:[#allocation14 + $0x2c] sm:$0xf]
        %v1915 = vld [vmem:[#allocation14 + $0x30] sm:$0xf]
        %v1916 = vld [vmem:[#allocation14 + $0x34] sm:$0xf]
        %v1917 = vld [vmem:[#allocation14 + $0x38] sm:$0xf]
        %v1918 = vld [vmem:[#allocation14 + $0x3c] sm:$0xf]
        %v1919 = vld [vmem:[#allocation16] sm:$0x1]
        %v1921 = vlaneseq
        %v1922 = vshrl.u32 %v1921, 7
        %v1923 = vsub.s32 0, %v1922
        %v1924 = vrot.slane %v1919, %v1923
        %v1942 = vunpack.c.l.b16 %v1903
        %v1943 = vunpack.c.l.b16 %v1904
        %v1944 = vunpack.c.l.b16 %v1905
        %v1945 = vunpack.c.l.b16 %v1906
        %v1946 = vunpack.c.l.b16 %v1907
        %v1947 = vunpack.c.l.b16 %v1908
        %v1948 = vunpack.c.l.b16 %v1909
        %v1949 = vunpack.c.l.b16 %v1910
        %v1950 = vunpack.c.l.b16 %v1911
        %v1951 = vunpack.c.l.b16 %v1912
        %v1952 = vunpack.c.l.b16 %v1913
        %v1953 = vunpack.c.l.b16 %v1914
        %v1954 = vunpack.c.l.b16 %v1915
        %v1955 = vunpack.c.l.b16 %v1916
        %v1956 = vunpack.c.l.b16 %v1917
        %v1957 = vunpack.c.l.b16 %v1918
        %v1958 = vpack.c.b16 %v1943, %v1942
        %v1959 = vpack.c.b16 %v1945, %v1944
        %v1960 = vpack.c.b16 %v1947, %v1946
        %v1961 = vpack.c.b16 %v1949, %v1948
        %v1962 = vpack.c.b16 %v1951, %v1950
        %v1963 = vpack.c.b16 %v1953, %v1952
        %v1964 = vpack.c.b16 %v1955, %v1954
        %v1965 = vpack.c.b16 %v1957, %v1956
        %1974 = vmatprep.subr.bf16.mxu0 0
        %1975 = vmatpush1.bf16.msra.mxu0 %v1958
        %1976 = vmatprep.subr.bf16.mxu0 0
        %1977 = vmatpush1.bf16.msra.mxu0 %v1959
        %1978 = vmatprep.subr.bf16.mxu0 0
        %1979 = vmatpush1.bf16.msra.mxu0 %v1960
        %1980 = vmatprep.subr.bf16.mxu0 0
        %1981 = vmatpush1.bf16.msra.mxu0 %v1961
        %1982 = vmatprep.subr.bf16.mxu0 0
        %1983 = vmatpush1.bf16.msra.mxu0 %v1962
        %1984 = vmatprep.subr.bf16.mxu0 0
        %1985 = vmatpush1.bf16.msra.mxu0 %v1963
        %1986 = vmatprep.subr.bf16.mxu0 0
        %1987 = vmatpush1.bf16.msra.mxu0 %v1964
        %1988 = vmatprep.subr.bf16.mxu0 0
        %1989 = vmatpush1.bf16.msra.mxu0 %v1965
        %1990 = vmatprep.subr.bf16.mxu0 0
        %1991 = vmatpush1.bf16.msra.mxu0 0
        %1992 = vmatprep.subr.bf16.mxu0 0
        %1993 = vmatpush1.bf16.msra.mxu0 0
        %1994 = vmatprep.subr.bf16.mxu0 0
        %1995 = vmatpush1.bf16.msra.mxu0 0
        %1996 = vmatprep.subr.bf16.mxu0 0
        %1997 = vmatpush1.bf16.msra.mxu0 0
        %1998 = vmatprep.subr.bf16.mxu0 0
        %1999 = vmatpush1.bf16.msra.mxu0 0
        %2000 = vmatprep.subr.bf16.mxu0 0
        %2001 = vmatpush1.bf16.msra.mxu0 0
        %2002 = vmatprep.subr.bf16.mxu0 0
        %2003 = vmatpush1.bf16.msra.mxu0 0
        %2004 = vmatprep.subr.bf16.mxu0 0
        %2005 = vmatpush1.bf16.msra.mxu0 0
        %2006 = vmatprep.mubr.bf16.mxu0 0
        %2007 = vmatmul.mubr.bf16.gmra.mrb[0].mxu0 %v1340
        %v2008 = vpop.f32.mrb[0].mxu0
        %v2009 = vadd.f32 %v1924, %v2008
        %v2010 = vpop.f32.mrb[0].mxu0
        %v2011 = vpop.f32.mrb[0].mxu0
        %v2012 = vpop.f32.mrb[0].mxu0
        %2013 = vdwg.mxu0
        %v2014 = vld [vmem:[#allocation17] sm:$0xf]
        %v2015 = vld [vmem:[#allocation17 + $0x4] sm:$0xf]
        %v2016 = vld [vmem:[#allocation17 + $0x8] sm:$0xf]
        %v2017 = vld [vmem:[#allocation17 + $0xc] sm:$0xf]
        %v2018 = vld [vmem:[#allocation17 + $0x10] sm:$0xf]
        %v2019 = vld [vmem:[#allocation17 + $0x14] sm:$0xf]
        %v2020 = vld [vmem:[#allocation17 + $0x18] sm:$0xf]
        %v2021 = vld [vmem:[#allocation17 + $0x1c] sm:$0xf]
        %v2022 = vpack.c.bf16 %v1896, %v1895
        %v2023 = vpack.c.bf16 %v1898, %v1897
        %v2024 = vpack.c.bf16 %v1900, %v1899
        %v2025 = vpack.c.bf16 %v1902, %v1901
        %v2034 = vunpack.c.l.b16 %v2014
        %v2035 = vunpack.c.l.b16 %v2015
        %v2036 = vunpack.c.l.b16 %v2016
        %v2037 = vunpack.c.l.b16 %v2017
        %v2038 = vunpack.c.l.b16 %v2018
        %v2039 = vunpack.c.l.b16 %v2019
        %v2040 = vunpack.c.l.b16 %v2020
        %v2041 = vunpack.c.l.b16 %v2021
        %v2042 = vpack.c.b16 %v2035, %v2034
        %v2043 = vpack.c.b16 %v2037, %v2036
        %v2044 = vpack.c.b16 %v2039, %v2038
        %v2045 = vpack.c.b16 %v2041, %v2040
        %v2051 = vsel %vm1051, %v2022, 0
        %v2054 = vsel %vm1051, %v2023, 0
        %v2057 = vsel %vm1051, %v2024, 0
        %v2060 = vsel %vm1051, %v2025, 0
        %2062 = vmatprep.subr.bf16.mxu0 0
        %2063 = vmatpush1.bf16.msra.mxu0 %v2042
        %2064 = vmatprep.subr.bf16.mxu0 0
        %2065 = vmatpush1.bf16.msra.mxu0 %v2043
        %2066 = vmatprep.subr.bf16.mxu0 0
        %2067 = vmatpush1.bf16.msra.mxu0 %v2044
        %2068 = vmatprep.subr.bf16.mxu0 0
        %2069 = vmatpush1.bf16.msra.mxu0 %v2045
        %2070 = vmatprep.subr.bf16.mxu0 0
        %2071 = vmatpush1.bf16.msra.mxu0 0
        %2072 = vmatprep.subr.bf16.mxu0 0
        %2073 = vmatpush1.bf16.msra.mxu0 0
        %2074 = vmatprep.subr.bf16.mxu0 0
        %2075 = vmatpush1.bf16.msra.mxu0 0
        %2076 = vmatprep.subr.bf16.mxu0 0
        %2077 = vmatpush1.bf16.msra.mxu0 0
        %2078 = vmatprep.subr.bf16.mxu0 0
        %2079 = vmatpush1.bf16.msra.mxu0 0
        %2080 = vmatprep.subr.bf16.mxu0 0
        %2081 = vmatpush1.bf16.msra.mxu0 0
        %2082 = vmatprep.subr.bf16.mxu0 0
        %2083 = vmatpush1.bf16.msra.mxu0 0
        %2084 = vmatprep.subr.bf16.mxu0 0
        %2085 = vmatpush1.bf16.msra.mxu0 0
        %2086 = vmatprep.subr.bf16.mxu0 0
        %2087 = vmatpush1.bf16.msra.mxu0 0
        %2088 = vmatprep.subr.bf16.mxu0 0
        %2089 = vmatpush1.bf16.msra.mxu0 0
        %2090 = vmatprep.subr.bf16.mxu0 0
        %2091 = vmatpush1.bf16.msra.mxu0 0
        %2092 = vmatprep.subr.bf16.mxu0 0
        %2093 = vmatpush1.bf16.msra.mxu0 0
        %2094 = vmatprep.mubr.bf16.mxu0 0
        %2095 = vmatmul.mubr.bf16.gmra.mrb[0].mxu0 %v2051
        %v2096 = vpop.f32.mrb[0].mxu0
        %v2097 = vadd.f32 0.0, %v2096
        %v2098 = vpop.f32.mrb[0].mxu0
        %v2099 = vpop.f32.mrb[0].mxu0
        %v2100 = vadd.f32 0.0, %v2099
        %v2101 = vpop.f32.mrb[0].mxu0
        %2102 = vmatprep.mubr.bf16.mxu0 0
        %2103 = vmatmul.mubr.bf16.gmra.mrb[0].mxu0 %v2054
        %v2104 = vpop.f32.mrb[0].mxu0
        %v2105 = vadd.f32 0.0, %v2104
        %v2106 = vpop.f32.mrb[0].mxu0
        %v2107 = vpop.f32.mrb[0].mxu0
        %v2108 = vadd.f32 0.0, %v2107
        %v2109 = vpop.f32.mrb[0].mxu0
        %2110 = vmatprep.mubr.bf16.mxu0 0
        %2111 = vmatmul.mubr.bf16.gmra.mrb[0].mxu0 %v2057
        %v2112 = vpop.f32.mrb[0].mxu0
        %v2113 = vadd.f32 0.0, %v2112
        %v2114 = vpop.f32.mrb[0].mxu0
        %v2115 = vpop.f32.mrb[0].mxu0
        %v2116 = vadd.f32 0.0, %v2115
        %v2117 = vpop.f32.mrb[0].mxu0
        %2118 = vmatprep.mubr.bf16.mxu0 0
        %2119 = vmatmul.mubr.bf16.gmra.mrb[0].mxu0 %v2060
        %v2120 = vpop.f32.mrb[0].mxu0
        %v2121 = vadd.f32 0.0, %v2120
        %v2122 = vpop.f32.mrb[0].mxu0
        %v2123 = vpop.f32.mrb[0].mxu0
        %v2124 = vadd.f32 0.0, %v2123
        %v2125 = vpop.f32.mrb[0].mxu0
        %2126 = vdwg.mxu0
        %v2127 = vadd.f32 %v2097, %v2009
        %v2128 = vadd.f32 %v2100, %v2009
        %v2129 = vadd.f32 %v2105, %v2009
        %v2130 = vadd.f32 %v2108, %v2009
        %v2131 = vadd.f32 %v2113, %v2009
        %v2132 = vadd.f32 %v2116, %v2009
        %v2133 = vadd.f32 %v2121, %v2009
        %v2134 = vadd.f32 %v2124, %v2009
        %v2135 = vld [vmem:[#allocation19] sm:$0x1]
        %v2137 = vlaneseq
        %v2138 = vshrl.u32 %v2137, 7
        %v2139 = vsub.s32 0, %v2138
        %v2140 = vrot.slane %v2135, %v2139
        %v2142 = vadd.f32 %v2127, %v2140
        %v2143 = vadd.f32 %v2128, %v2140
        %v2144 = vadd.f32 %v2129, %v2140
        %v2145 = vadd.f32 %v2130, %v2140
        %v2146 = vadd.f32 %v2131, %v2140
        %v2147 = vadd.f32 %v2132, %v2140
        %v2148 = vadd.f32 %v2133, %v2140
        %v2149 = vadd.f32 %v2134, %v2140
        %v2150 = vld [vmem:[#allocation20] sm:$0x1]
        %v2151 = vld [vmem:[#allocation22] sm:$0x1]
        %2152 = vadd.xlane.f32.xlu0 %v2142
        %v2153 = vpop.xlane.xlu0 %2152
        %2154 = vadd.xlane.f32.xlu0 %v2143
        %v2155 = vpop.xlane.xlu0 %2154
        %2156 = vadd.xlane.f32.xlu0 %v2144
        %v2157 = vpop.xlane.xlu0 %2156
        %2158 = vadd.xlane.f32.xlu0 %v2145
        %v2159 = vpop.xlane.xlu0 %2158
        %2160 = vadd.xlane.f32.xlu0 %v2146
        %v2161 = vpop.xlane.xlu0 %2160
        %2162 = vadd.xlane.f32.xlu0 %v2147
        %v2163 = vpop.xlane.xlu0 %2162
        %2164 = vadd.xlane.f32.xlu0 %v2148
        %v2165 = vpop.xlane.xlu0 %2164
        %2166 = vadd.xlane.f32.xlu0 %v2149
        %v2167 = vpop.xlane.xlu0 %2166
        %v2168 = vmul.f32 %v2153, %v1099
        %v2169 = vmul.f32 %v2155, %v1099
        %v2170 = vmul.f32 %v2157, %v1099
        %v2171 = vmul.f32 %v2159, %v1099
        %v2172 = vmul.f32 %v2161, %v1099
        %v2173 = vmul.f32 %v2163, %v1099
        %v2174 = vmul.f32 %v2165, %v1099
        %v2175 = vmul.f32 %v2167, %v1099
        %v2176 = vsub.f32 %v2142, %v2168
        %v2177 = vsub.f32 %v2143, %v2169
        %v2178 = vsub.f32 %v2144, %v2170
        %v2179 = vsub.f32 %v2145, %v2171
        %v2180 = vsub.f32 %v2146, %v2172
        %v2181 = vsub.f32 %v2147, %v2173
        %v2182 = vsub.f32 %v2148, %v2174
        %v2183 = vsub.f32 %v2149, %v2175
        %v2184 = vmul.f32 %v2176, %v2176
        %v2185 = vmul.f32 %v2177, %v2177
        %v2186 = vmul.f32 %v2178, %v2178
        %v2187 = vmul.f32 %v2179, %v2179
        %v2188 = vmul.f32 %v2180, %v2180
        %v2189 = vmul.f32 %v2181, %v2181
        %v2190 = vmul.f32 %v2182, %v2182
        %v2191 = vmul.f32 %v2183, %v2183
        %2192 = vadd.xlane.f32.xlu0 %v2184
        %v2193 = vpop.xlane.xlu0 %2192
        %2194 = vadd.xlane.f32.xlu0 %v2185
        %v2195 = vpop.xlane.xlu0 %2194
        %2196 = vadd.xlane.f32.xlu0 %v2186
        %v2197 = vpop.xlane.xlu0 %2196
        %2198 = vadd.xlane.f32.xlu0 %v2187
        %v2199 = vpop.xlane.xlu0 %2198
        %2200 = vadd.xlane.f32.xlu0 %v2188
        %v2201 = vpop.xlane.xlu0 %2200
        %2202 = vadd.xlane.f32.xlu0 %v2189
        %v2203 = vpop.xlane.xlu0 %2202
        %2204 = vadd.xlane.f32.xlu0 %v2190
        %v2205 = vpop.xlane.xlu0 %2204
        %2206 = vadd.xlane.f32.xlu0 %v2191
        %v2207 = vpop.xlane.xlu0 %2206
        %v2208 = vmul.f32 %v2193, %v1099
        %v2209 = vmul.f32 %v2195, %v1099
        %v2210 = vmul.f32 %v2197, %v1099
        %v2211 = vmul.f32 %v2199, %v1099
        %v2212 = vmul.f32 %v2201, %v1099
        %v2213 = vmul.f32 %v2203, %v1099
        %v2214 = vmul.f32 %v2205, %v1099
        %v2215 = vmul.f32 %v2207, %v1099
        %v2216 = vadd.f32 %v2208, 1e-05
        %v2217 = vadd.f32 %v2209, 1e-05
        %v2218 = vadd.f32 %v2210, 1e-05
        %v2219 = vadd.f32 %v2211, 1e-05
        %v2220 = vadd.f32 %v2212, 1e-05
        %v2221 = vadd.f32 %v2213, 1e-05
        %v2222 = vadd.f32 %v2214, 1e-05
        %v2223 = vadd.f32 %v2215, 1e-05
        %v2224 = vrsqrt.pop %v2216
        %v2225 = vrsqrt.pop %v2217
        %v2226 = vrsqrt.pop %v2218
        %v2227 = vrsqrt.pop %v2219
        %v2228 = vrsqrt.pop %v2220
        %v2229 = vrsqrt.pop %v2221
        %v2230 = vrsqrt.pop %v2222
        %v2231 = vrsqrt.pop %v2223
        %v2232 = vmul.f32 %v2176, %v2224
        %v2233 = vmul.f32 %v2177, %v2225
        %v2234 = vmul.f32 %v2178, %v2226
        %v2235 = vmul.f32 %v2179, %v2227
        %v2236 = vmul.f32 %v2180, %v2228
        %v2237 = vmul.f32 %v2181, %v2229
        %v2238 = vmul.f32 %v2182, %v2230
        %v2239 = vmul.f32 %v2183, %v2231
        %v2241 = vlaneseq
        %v2242 = vshrl.u32 %v2241, 7
        %v2243 = vsub.s32 0, %v2242
        %v2244 = vrot.slane %v2150, %v2243
        %v2246 = vmul.f32 %v2232, %v2244
        %v2247 = vmul.f32 %v2233, %v2244
        %v2248 = vmul.f32 %v2234, %v2244
        %v2249 = vmul.f32 %v2235, %v2244
        %v2250 = vmul.f32 %v2236, %v2244
        %v2251 = vmul.f32 %v2237, %v2244
        %v2252 = vmul.f32 %v2238, %v2244
        %v2253 = vmul.f32 %v2239, %v2244
        %v2255 = vlaneseq
        %v2256 = vshrl.u32 %v2255, 7
        %v2257 = vsub.s32 0, %v2256
        %v2258 = vrot.slane %v2151, %v2257
        %v2260 = vadd.f32 %v2246, %v2258
        %v2261 = vadd.f32 %v2247, %v2258
        %v2262 = vadd.f32 %v2248, %v2258
        %v2263 = vadd.f32 %v2249, %v2258
        %v2264 = vadd.f32 %v2250, %v2258
        %v2265 = vadd.f32 %v2251, %v2258
        %v2266 = vadd.f32 %v2252, %v2258
        %v2267 = vadd.f32 %v2253, %v2258
        %v2268 = vmax.f32 %v2260, 0.0
        %v2269 = vmax.f32 %v2261, 0.0
        %v2270 = vmax.f32 %v2262, 0.0
        %v2271 = vmax.f32 %v2263, 0.0
        %v2272 = vmax.f32 %v2264, 0.0
        %v2273 = vmax.f32 %v2265, 0.0
        %v2274 = vmax.f32 %v2266, 0.0
        %v2275 = vmax.f32 %v2267, 0.0
        %v2276 = vld [vmem:[%s24] sm:$0xff]
        %v2277 = vld [vmem:[%s24 + $0x8] sm:$0xff]
        %v2278 = vld [vmem:[%s24 + $0x10] sm:$0xff]
        %v2279 = vld [vmem:[%s24 + $0x18] sm:$0xff]
        %v2280 = vld [vmem:[%s24 + $0x20] sm:$0xff]
        %v2281 = vld [vmem:[%s24 + $0x28] sm:$0xff]
        %v2282 = vld [vmem:[%s24 + $0x30] sm:$0xff]
        %v2283 = vld [vmem:[%s24 + $0x38] sm:$0xff]
        %v2284 = vld [vmem:[%s24 + $0x40] sm:$0xff]
        %v2285 = vld [vmem:[%s24 + $0x48] sm:$0xff]
        %v2286 = vld [vmem:[%s24 + $0x50] sm:$0xff]
        %v2287 = vld [vmem:[%s24 + $0x58] sm:$0xff]
        %v2288 = vld [vmem:[%s24 + $0x60] sm:$0xff]
        %v2289 = vld [vmem:[%s24 + $0x68] sm:$0xff]
        %v2290 = vld [vmem:[%s24 + $0x70] sm:$0xff]
        %v2291 = vld [vmem:[%s24 + $0x78] sm:$0xff]
        %v2292 = vpack.c.bf16 %v2269, %v2268
        %v2293 = vpack.c.bf16 %v2271, %v2270
        %v2294 = vpack.c.bf16 %v2273, %v2272
        %v2295 = vpack.c.bf16 %v2275, %v2274
        %v2296 = vld [vmem:[%s25] sm:$0x3]
        %v2298 = vlaneseq
        %v2299 = vshrl.u32 %v2298, 7
        %v2300 = vsub.s32 0, %v2299
        %v2301 = vrot.slane %v2296, %v2300
        %v2302 = vlaneseq
        %v2303 = vshrl.u32 %v2302, 7
        %v2304 = vsub.s32 1, %v2303
        %v2305 = vrot.slane %v2296, %v2304
        %v2324 = vunpack.c.l.b16 %v2276
        %v2325 = vunpack.c.h.b16 %v2276
        %v2326 = vunpack.c.l.b16 %v2277
        %v2327 = vunpack.c.h.b16 %v2277
        %v2328 = vunpack.c.l.b16 %v2278
        %v2329 = vunpack.c.h.b16 %v2278
        %v2330 = vunpack.c.l.b16 %v2279
        %v2331 = vunpack.c.h.b16 %v2279
        %v2332 = vunpack.c.l.b16 %v2280
        %v2333 = vunpack.c.h.b16 %v2280
        %v2334 = vunpack.c.l.b16 %v2281
        %v2335 = vunpack.c.h.b16 %v2281
        %v2336 = vunpack.c.l.b16 %v2282
        %v2337 = vunpack.c.h.b16 %v2282
        %v2338 = vunpack.c.l.b16 %v2283
        %v2339 = vunpack.c.h.b16 %v2283
        %v2340 = vunpack.c.l.b16 %v2284
        %v2341 = vunpack.c.h.b16 %v2284
        %v2342 = vunpack.c.l.b16 %v2285
        %v2343 = vunpack.c.h.b16 %v2285
        %v2344 = vunpack.c.l.b16 %v2286
        %v2345 = vunpack.c.h.b16 %v2286
        %v2346 = vunpack.c.l.b16 %v2287
        %v2347 = vunpack.c.h.b16 %v2287
        %v2348 = vunpack.c.l.b16 %v2288
        %v2349 = vunpack.c.h.b16 %v2288
        %v2350 = vunpack.c.l.b16 %v2289
        %v2351 = vunpack.c.h.b16 %v2289
        %v2352 = vunpack.c.l.b16 %v2290
        %v2353 = vunpack.c.h.b16 %v2290
        %v2354 = vunpack.c.l.b16 %v2291
        %v2355 = vunpack.c.h.b16 %v2291
        %v2356 = vpack.c.b16 %v2326, %v2324
        %v2357 = vpack.c.b16 %v2327, %v2325
        %v2358 = vpack.c.b16 %v2330, %v2328
        %v2359 = vpack.c.b16 %v2331, %v2329
        %v2360 = vpack.c.b16 %v2334, %v2332
        %v2361 = vpack.c.b16 %v2335, %v2333
        %v2362 = vpack.c.b16 %v2338, %v2336
        %v2363 = vpack.c.b16 %v2339, %v2337
        %v2364 = vpack.c.b16 %v2342, %v2340
        %v2365 = vpack.c.b16 %v2343, %v2341
        %v2366 = vpack.c.b16 %v2346, %v2344
        %v2367 = vpack.c.b16 %v2347, %v2345
        %v2368 = vpack.c.b16 %v2350, %v2348
        %v2369 = vpack.c.b16 %v2351, %v2349
        %v2370 = vpack.c.b16 %v2354, %v2352
        %v2371 = vpack.c.b16 %v2355, %v2353
        %2388 = vmatprep.subr.bf16.mxu0 %v2357
        %2389 = vmatpush1.bf16.msra.mxu0 %v2356
        %2390 = vmatprep.subr.bf16.mxu0 %v2359
        %2391 = vmatpush1.bf16.msra.mxu0 %v2358
        %2392 = vmatprep.subr.bf16.mxu0 %v2361
        %2393 = vmatpush1.bf16.msra.mxu0 %v2360
        %2394 = vmatprep.subr.bf16.mxu0 %v2363
        %2395 = vmatpush1.bf16.msra.mxu0 %v2362
        %2396 = vmatprep.subr.bf16.mxu0 %v2365
        %2397 = vmatpush1.bf16.msra.mxu0 %v2364
        %2398 = vmatprep.subr.bf16.mxu0 %v2367
        %2399 = vmatpush1.bf16.msra.mxu0 %v2366
        %2400 = vmatprep.subr.bf16.mxu0 %v2369
        %2401 = vmatpush1.bf16.msra.mxu0 %v2368
        %2402 = vmatprep.subr.bf16.mxu0 %v2371
        %2403 = vmatpush1.bf16.msra.mxu0 %v2370
        %2404 = vmatprep.subr.bf16.mxu0 0
        %2405 = vmatpush1.bf16.msra.mxu0 0
        %2406 = vmatprep.subr.bf16.mxu0 0
        %2407 = vmatpush1.bf16.msra.mxu0 0
        %2408 = vmatprep.subr.bf16.mxu0 0
        %2409 = vmatpush1.bf16.msra.mxu0 0
        %2410 = vmatprep.subr.bf16.mxu0 0
        %2411 = vmatpush1.bf16.msra.mxu0 0
        %2412 = vmatprep.subr.bf16.mxu0 0
        %2413 = vmatpush1.bf16.msra.mxu0 0
        %2414 = vmatprep.subr.bf16.mxu0 0
        %2415 = vmatpush1.bf16.msra.mxu0 0
        %2416 = vmatprep.subr.bf16.mxu0 0
        %2417 = vmatpush1.bf16.msra.mxu0 0
        %2418 = vmatprep.subr.bf16.mxu0 0
        %2419 = vmatpush1.bf16.msra.mxu0 0
        %2420 = vmatprep.mubr.bf16.mxu0 0
        %2421 = vmatmul.mubr.bf16.gmra.mrb[0].mxu0 %v2292
        %v2422 = vpop.f32.mrb[0].mxu0
        %v2423 = vadd.f32 %v2301, %v2422
        %v2424 = vpop.f32.mrb[0].mxu0
        %v2425 = vadd.f32 %v2305, %v2424
        %v2426 = vpop.f32.mrb[0].mxu0
        %v2427 = vadd.f32 %v2301, %v2426
        %v2428 = vpop.f32.mrb[0].mxu0
        %v2429 = vadd.f32 %v2305, %v2428
        %2430 = vmatprep.mubr.bf16.mxu0 0
        %2431 = vmatmul.mubr.bf16.gmra.mrb[0].mxu0 %v2293
        %v2432 = vpop.f32.mrb[0].mxu0
        %v2433 = vadd.f32 %v2301, %v2432
        %v2434 = vpop.f32.mrb[0].mxu0
        %v2435 = vadd.f32 %v2305, %v2434
        %v2436 = vpop.f32.mrb[0].mxu0
        %v2437 = vadd.f32 %v2301, %v2436
        %v2438 = vpop.f32.mrb[0].mxu0
        %v2439 = vadd.f32 %v2305, %v2438
        %2440 = vmatprep.mubr.bf16.mxu0 0
        %2441 = vmatmul.mubr.bf16.gmra.mrb[0].mxu0 %v2294
        %v2442 = vpop.f32.mrb[0].mxu0
        %v2443 = vadd.f32 %v2301, %v2442
        %v2444 = vpop.f32.mrb[0].mxu0
        %v2445 = vadd.f32 %v2305, %v2444
        %v2446 = vpop.f32.mrb[0].mxu0
        %v2447 = vadd.f32 %v2301, %v2446
        %v2448 = vpop.f32.mrb[0].mxu0
        %v2449 = vadd.f32 %v2305, %v2448
        %2450 = vmatprep.mubr.bf16.mxu0 0
        %2451 = vmatmul.mubr.bf16.gmra.mrb[0].mxu0 %v2295
        %v2452 = vpop.f32.mrb[0].mxu0
        %v2453 = vadd.f32 %v2301, %v2452
        %v2454 = vpop.f32.mrb[0].mxu0
        %v2455 = vadd.f32 %v2305, %v2454
        %v2456 = vpop.f32.mrb[0].mxu0
        %v2457 = vadd.f32 %v2301, %v2456
        %v2458 = vpop.f32.mrb[0].mxu0
        %v2459 = vadd.f32 %v2305, %v2458
        %2460 = vdwg.mxu0
        %2461 = vst [vmem:[%s999] sm:$0xff] %v2423
        %2462 = vst [vmem:[%s999 + $0x8] sm:$0xff] %v2425
        %2463 = vst [vmem:[%s999 + $0x10] sm:$0xff] %v2427
        %2464 = vst [vmem:[%s999 + $0x18] sm:$0xff] %v2429
        %2465 = vst [vmem:[%s999 + $0x20] sm:$0xff] %v2433
        %2466 = vst [vmem:[%s999 + $0x28] sm:$0xff] %v2435
        %2467 = vst [vmem:[%s999 + $0x30] sm:$0xff] %v2437
        %2468 = vst [vmem:[%s999 + $0x38] sm:$0xff] %v2439
        %2469 = vst [vmem:[%s999 + $0x40] sm:$0xff] %v2443
        %2470 = vst [vmem:[%s999 + $0x48] sm:$0xff] %v2445
        %2471 = vst [vmem:[%s999 + $0x50] sm:$0xff] %v2447
        %2472 = vst [vmem:[%s999 + $0x58] sm:$0xff] %v2449
        %2473 = vst [vmem:[%s999 + $0x60] sm:$0xff] %v2453
        %2474 = vst [vmem:[%s999 + $0x68] sm:$0xff] %v2455
        %2475 = vst [vmem:[%s999 + $0x70] sm:$0xff] %v2457
        %2476 = vst [vmem:[%s999 + $0x78] sm:$0xff] %v2459
        %s2477 = sand.u32 %s629, 1
        %s2478 = scalar_lea.sflag [#allocation4], %s2477
        %s2479 = sand.u32 %s629, 1
        %s2480 = smul.addr %s2479, 128
        %s2481 = scalar_lea.vmem [#allocation23], %s2480
        // Predicated region
        $region177: #{tpu_custom_call.1} parent=123 // pred_check
          %p2482 = pneg %p639
        $region178: #{tpu_custom_call.1} parent=123 // pred_check_branch
          %2484 = sbr.rel (%p2482) target = $region180
        $region179: #{tpu_custom_call.1} parent=123 // pred_region
          %s2485 = smul.u32 8, %s54
          %s2487 = ssub.s32 2048, 2048
          %2488 = vsyncadd %s2478, %s2487
          %s2489 = smul.addr %s2485, 2
          %s2490 = smul.addr %s53, 16
          %s2491 = sadd.s32 %s2489, %s2490
          %s2492 = smul.addr %s2491, 128
          %s2493 = scalar_lea.hbm %s26, %s2492
          %s2494 = sshll.u32 %s2481, 4
          %s2495 = int_to_ptr.vmem [resolvable:$true] %s2494
          %2500 = dma.vmem_to_hbm [thread:$0]  %s2495, 2048, %s2493, %s2478, 256, 256, 16
        $region180: #{tpu_custom_call.1} parent=123 // pred_fallthru
          _
      $region124: #{tpu_custom_call.1} parent=5 // pred_fallthru
        _
      %p2501 = scmp.le.s32.totalorder 2, %s44
      // Predicated region
      $region181: #{tpu_custom_call.1} parent=5 // pred_check
        %p2502 = pneg %p2501
      $region182: #{tpu_custom_call.1} parent=5 // pred_check_branch
        %2504 = sbr.rel (%p2502) target = $region184
      $region183: #{tpu_custom_call.1} parent=5 // pred_region
        %s2505 = ssub.s32 %s44, 2
        // Predicated region
        $region185: #{tpu_custom_call.1} parent=183 // pred_check
          %p2506 = pneg %p645
        $region186: #{tpu_custom_call.1} parent=183 // pred_check_branch
          %2508 = sbr.rel (%p2506) target = $region188
        $region187: #{tpu_custom_call.1} parent=183 // pred_region
          %s2509 = sand.u32 %s630, 1
          %s2510 = scalar_lea.sflag [#allocation4], %s2509
          %s2511 = sand.u32 %s630, 1
          %s2512 = smul.addr %s2511, 128
          %s2513 = scalar_lea.vmem [#allocation23], %s2512
          %2514 = dma.done %s2510, 2048
        $region188: #{tpu_custom_call.1} parent=183 // pred_fallthru
          _
      $region184: #{tpu_custom_call.1} parent=5 // pred_fallthru
        _
    $region6: #{tpu_custom_call.1} parent=1 // loop_footer
      %s48 = sadd.s32 1, %s44
    $region7: #{tpu_custom_call.1} parent=1 // loop_footer_branch
      %43 = sbr.rel target = $region3
    $region8: #{tpu_custom_call.1} parent=1 // loop_exit
      _
    %2515 = vsyncpa [#allocation3], 1
    %s2516 = scalar_lea.sflag [#allocation3], 1
    %2517 = vsyncpa %s2516, 1
    %2518 = vsyncpa [#allocation6], 1
    %2519 = vsyncpa [#allocation9], 1
    %2520 = vsyncpa [#allocation12], 1
    %2521 = vsyncpa [#allocation15], 1
    %2522 = vsyncpa [#allocation18], 1
    %2523 = vsyncpa [#allocation21], 1
    %2524 = vsyncpa [#allocation4], 1
    %s2525 = scalar_lea.sflag [#allocation4], 1
    %2526 = vsyncpa %s2525, 1

</llo_original>
